<compile_context>
chip_gen: v7x
topology: tpu7x:2x2x1
jax: 0.10.0
libtpu: 0.0.40
codegen_flags: <defaults>
</compile_context>

<pallas_src>
import jax
import jax.numpy as jnp
from jax.experimental import pallas as pl
from jax.experimental.pallas import tpu as pltpu

# ----------------------- module-consistent configuration --------------------
IN_CHANNELS = 16                  # model_cfg['in_channels']
MLPS        = [[16], [16]]        # model_cfg['roi_grid_pool']['mlps'] -> c_out = 32
GRID_SIZE   = 4                   # model_cfg['roi_grid_pool']['grid_size']
C_OUT       = sum(m[-1] for m in MLPS)           # 32
G3          = GRID_SIZE ** 3                     # 64
PRE_CHANNEL = G3 * C_OUT                         # 2048
N_FC        = 128                 # model_cfg['n_fc_neurons']
NUM_CLS     = 1                   # model_cfg['num_cls']
CODE_SIZE   = 7
OUT_REAL    = 2 * NUM_CLS + NUM_CLS * CODE_SIZE  # cls | iou | reg = 9
OUT_PAD     = 128                 # lane-dense output width (zero-padded)
N_ROIS      = 20                  # number of fused ROIs in this example


def _round_up(v, m):
    return ((v + m - 1) // m) * m


# ------------------------------- Pallas kernel -------------------------------
def head_kernel(x_ref,
                ws1_ref, ws2_ref,          # shared_fc_layers (bf16)
                wb1_ref,                   # fused branch layer 1 (bf16, 128->384)
                wb2_ref,                   # branch layer 2 stacked (3,128,128) bf16
                w3_ref, b3_ref,            # fused final projection (f32, lane-padded)
                out_ref):
    f32 = jnp.float32
    bf16 = jnp.bfloat16

    def mm(a, w):
        # MXU matmul with f32 accumulation.
        return jnp.dot(a, w, preferred_element_type=f32)

    x = x_ref[...]                                              # (TN, 2048) bf16
    h = jnp.maximum(mm(x, ws1_ref[...]), 0.0).astype(bf16)      # shared fc 1 -> (TN, 128)
    s = jnp.maximum(mm(h, ws2_ref[...]), 0.0).astype(bf16)      # shared fc 2 -> (TN, 128)
    y = jnp.maximum(mm(s, wb1_ref[...]), 0.0).astype(bf16)      # branch layer 1 -> (TN, 384)

    # Branch layer 2: three independent 128x128 matmuls on 128-aligned lane
    # slices (replaces the block-diagonal 384x384 weight full of zeros).
    parts = [mm(y[:, g * N_FC:(g + 1) * N_FC], wb2_ref[g]) for g in range(3)]
    y2 = jnp.maximum(jnp.concatenate(parts, axis=1), 0.0)       # (TN, 384) f32

    # Fused final heads (cls|iou|reg), kept in f32 for accuracy of the tiny
    # reg weights; output is one lane-dense (TN, 128) block (no masked vst).
    out_ref[...] = mm(y2, w3_ref[...]) + b3_ref[...]


# ------------------------------- wrapper (glue) -------------------------------
def roi_head_forward(pooled_features, prepared):
    """pooled_features: (N_roi, grid^3, c_out) -> (rcnn_cls, rcnn_iou, rcnn_reg)."""
    n, g3, c = pooled_features.shape
    assert g3 == G3 and c == C_OUT
    d_in = g3 * c

    # Row-major flatten only -- the channel-major permutation required by the
    # PyTorch head is folded into ws1's rows in prepare_params().  Cast to
    # bf16 ONCE here so the kernel DMAs half the x bytes and does no per-step
    # input cast.
    x = pooled_features.reshape(n, d_in).astype(jnp.bfloat16)

    # Pad rows to a multiple of 16 (bf16 MXU LHS packing).  Large N uses
    # 256-row tiles; small N is a single padded grid step.
    pn = _round_up(n, 16)
    if pn <= 256:
        tn = pn
    else:
        tn = 256
        pn = _round_up(pn, tn)
    if pn != n:
        x = jnp.pad(x, ((0, pn - n), (0, 0)))
    grid = (pn // tn,)

    ws1, ws2, wb1, wb2, w3, b3 = prepared
    in_specs = [
        pl.BlockSpec((tn, d_in), lambda i: (i, 0)),
        pl.BlockSpec(ws1.shape, lambda i: (0, 0)),
        pl.BlockSpec(ws2.shape, lambda i: (0, 0)),
        pl.BlockSpec(wb1.shape, lambda i: (0, 0)),
        pl.BlockSpec(wb2.shape, lambda i: (0, 0, 0)),
        pl.BlockSpec(w3.shape, lambda i: (0, 0)),
        pl.BlockSpec(b3.shape, lambda i: (0, 0)),
    ]
    out_specs = pl.BlockSpec((tn, OUT_PAD), lambda i: (i, 0))
    out_shape = jax.ShapeDtypeStruct((pn, OUT_PAD), jnp.float32)

    # Small N: keep all rows on one TensorCore (the kernel is weight-DMA
    # bound; megacore-splitting would duplicate the constant weight streams).
    semantics = ("arbitrary",) if pn < 512 else ("parallel",)

    out = pl.pallas_call(
        head_kernel,
        grid=grid,
        in_specs=in_specs,
        out_specs=out_specs,
        out_shape=out_shape,
        compiler_params=pltpu.CompilerParams(
            dimension_semantics=semantics,
            vmem_limit_bytes=32 * 1024 * 1024,
        ),
    )(x, *prepared)

    rcnn_cls = out[:n, 0:NUM_CLS]
    rcnn_iou = out[:n, NUM_CLS:2 * NUM_CLS]
    rcnn_reg = out[:n, 2 * NUM_CLS:OUT_REAL]
    return rcnn_cls, rcnn_iou, rcnn_reg


# --------------------------- deterministic parameters -------------------------
def make_params(key):
    """PyTorch-convention weights, stored pre-transposed as (C_in, C_out).

    ws1 rows follow the PyTorch channel-major flatten order
    (index k = channel * grid^3 + grid_cell), exactly like the original module.
    """
    ks = list(jax.random.split(key, 16))
    k = iter(ks)

    def xavier(cin, cout):
        std = (2.0 / (cin + cout)) ** 0.5
        return jax.random.normal(next(k), (cin, cout), jnp.float32) * std

    ws1 = xavier(PRE_CHANNEL, N_FC)
    ws2 = xavier(N_FC, N_FC)

    wc1, wc2 = xavier(N_FC, N_FC), xavier(N_FC, N_FC)
    wc3 = xavier(N_FC, NUM_CLS)
    bc3 = jnp.zeros((1, NUM_CLS), jnp.float32)

    wi1, wi2 = xavier(N_FC, N_FC), xavier(N_FC, N_FC)
    wi3 = xavier(N_FC, NUM_CLS)
    bi3 = jnp.zeros((1, NUM_CLS), jnp.float32)

    wr1, wr2 = xavier(N_FC, N_FC), xavier(N_FC, N_FC)
    # reg_layers[-1].weight ~ Normal(0, 0.001)
    wr3 = jax.random.normal(next(k), (N_FC, NUM_CLS * CODE_SIZE), jnp.float32) * 0.001
    br3 = jnp.zeros((1, NUM_CLS * CODE_SIZE), jnp.float32)

    return (ws1, ws2,
            wc1, wc2, wc3, bc3,
            wi1, wi2, wi3, bi3,
            wr1, wr2, wr3, br3)


def prepare_params(params):
    """One-time offline transform of PyTorch-layout params into kernel layout."""
    (ws1, ws2, wc1, wc2, wc3, bc3, wi1, wi2, wi3, bi3,
     wr1, wr2, wr3, br3) = params

    # 1) Fold the channel-major flatten (permute(0,2,1).reshape) into ws1's
    #    rows so the kernel can consume the plain row-major reshape:
    #    W[g*C + c, :] = ws1[c*G3 + g, :]
    ws1_rm = (ws1.reshape(C_OUT, G3, N_FC)
                 .transpose(1, 0, 2)
                 .reshape(PRE_CHANNEL, N_FC))

    # 2) Fuse branch layer-1: (N_FC, 3*N_FC)
    w1 = jnp.concatenate([wc1, wi1, wr1], axis=1)

    # 3) Branch layer-2 as a stacked (3, N_FC, N_FC) weight (NO structural
    #    zeros) -- the kernel applies each 128x128 block to its lane slice.
    w2 = jnp.stack([wc2, wi2, wr2], axis=0)

    # 4) Fuse the three final projections into one lane-padded (3*N_FC, OUT_PAD)
    #    weight; padded columns stay zero.  Kept in f32 (wr3 std=0.001 -> bf16
    #    rounding would cost real accuracy on rcnn_reg for ~96 KiB saved).
    w3 = jnp.zeros((3 * N_FC, OUT_PAD), jnp.float32)
    w3 = w3.at[0 * N_FC:1 * N_FC, 0:NUM_CLS].set(wc3)
    w3 = w3.at[1 * N_FC:2 * N_FC, NUM_CLS:2 * NUM_CLS].set(wi3)
    w3 = w3.at[2 * N_FC:3 * N_FC, 2 * NUM_CLS:OUT_REAL].set(wr3)

    b3 = jnp.zeros((1, OUT_PAD), jnp.float32)
    b3 = b3.at[:, 0:NUM_CLS].set(bc3)
    b3 = b3.at[:, NUM_CLS:2 * NUM_CLS].set(bi3)
    b3 = b3.at[:, 2 * NUM_CLS:OUT_REAL].set(br3)

    bf16 = jnp.bfloat16
    return (ws1_rm.astype(bf16), ws2.astype(bf16),
            w1.astype(bf16), w2.astype(bf16),
            w3, b3)  # final projection stays f32


# ------------------------------- plain-JAX reference --------------------------
def reference(pooled_features, params):
    """f32 reference with the exact PyTorch semantics (channel-major flatten)."""
    (ws1, ws2, wc1, wc2, wc3, bc3, wi1, wi2, wi3, bi3,
     wr1, wr2, wr3, br3) = params
    n = pooled_features.shape[0]
    x = jnp.transpose(pooled_features, (0, 2, 1)).reshape(n, -1)
    h = jnp.maximum(x @ ws1, 0.0)
    s = jnp.maximum(h @ ws2, 0.0)

    def br(w1, w2, w3, b3):
        y = jnp.maximum(s @ w1, 0.0)
        y = jnp.maximum(y @ w2, 0.0)
        return y @ w3 + b3

    return br(wc1, wc2, wc3, bc3), br(wi1, wi2, wi3, bi3), br(wr1, wr2, wr3, br3)


# ------------------------------------ main -------------------------------------
if __name__ == "__main__":
    key = jax.random.PRNGKey(0)
    k_feat, k_par = jax.random.split(key)

    # Stand-in for StackSAModuleMSG pooled output: (N_roi, grid^3, c_out)
    pooled_features = jax.random.normal(
        k_feat, (N_ROIS, G3, C_OUT), jnp.float32)
    params = make_params(k_par)
    prepared = prepare_params(params)

    rcnn_cls, rcnn_iou, rcnn_reg = jax.block_until_ready(
        roi_head_forward(pooled_features, prepared))

    ref_cls, ref_iou, ref_reg = reference(pooled_features, params)
    assert rcnn_cls.shape == (N_ROIS, NUM_CLS)
    assert rcnn_iou.shape == (N_ROIS, NUM_CLS)
    assert rcnn_reg.shape == (N_ROIS, NUM_CLS * CODE_SIZE)
    # Tolerance relaxed vs. the f32 reference because weights/activations feed
    # the MXU in bf16 (f32 accumulation); the final projection is f32.
    assert jnp.allclose(rcnn_cls, ref_cls, atol=2e-2, rtol=2e-2)
    assert jnp.allclose(rcnn_iou, ref_iou, atol=2e-2, rtol=2e-2)
    assert jnp.allclose(rcnn_reg, ref_reg, atol=2e-2, rtol=2e-2)

    print("KERNEL_OK")
</pallas_src>

<mosaic_0001>
module attributes {stable_mosaic.version = 11 : i64} {
  func.func @head_kernel(%arg0: i32, %arg1: memref<32x2048xbf16, #tpu.memory_space<vmem>>, %arg2: memref<2048x128xbf16, #tpu.memory_space<vmem>>, %arg3: memref<128x128xbf16, #tpu.memory_space<vmem>>, %arg4: memref<128x384xbf16, #tpu.memory_space<vmem>>, %arg5: memref<3x128x128xbf16, #tpu.memory_space<vmem>>, %arg6: memref<384x128xf32, #tpu.memory_space<vmem>>, %arg7: memref<1x128xf32, #tpu.memory_space<vmem>>, %arg8: memref<32x128xf32, #tpu.memory_space<vmem>>) attributes {dimension_semantics = [#tpu.dimension_semantics<arbitrary>], iteration_bounds = array<i64: 1>, scalar_prefetch = 0 : i64, scratch_operands = 0 : i64, tpu.core_type = #tpu.core_type<tc>, window_params = [{transform_indices = @transform_0, window_bounds = array<i64: 32, 2048>}, {pipeline_mode = #tpu.pipeline_mode<synchronous>, transform_indices = @transform_1, window_bounds = array<i64: 2048, 128>}, {pipeline_mode = #tpu.pipeline_mode<synchronous>, transform_indices = @transform_2, window_bounds = array<i64: 128, 128>}, {pipeline_mode = #tpu.pipeline_mode<synchronous>, transform_indices = @transform_3, window_bounds = array<i64: 128, 384>}, {pipeline_mode = #tpu.pipeline_mode<synchronous>, transform_indices = @transform_4, window_bounds = array<i64: 3, 128, 128>}, {pipeline_mode = #tpu.pipeline_mode<synchronous>, transform_indices = @transform_5, window_bounds = array<i64: 384, 128>}, {pipeline_mode = #tpu.pipeline_mode<synchronous>, transform_indices = @transform_6, window_bounds = array<i64: 1, 128>}, {transform_indices = @transform_7, window_bounds = array<i64: 32, 128>}]} {
    %c0 = arith.constant 0 : index
    %c0_0 = arith.constant 0 : index
    %0 = vector.load %arg1[%c0, %c0_0] : memref<32x2048xbf16, #tpu.memory_space<vmem>>, vector<32x2048xbf16>
    %c0_1 = arith.constant 0 : index
    %c0_2 = arith.constant 0 : index
    %1 = vector.load %arg2[%c0_1, %c0_2] : memref<2048x128xbf16, #tpu.memory_space<vmem>>, vector<2048x128xbf16>
    %cst = arith.constant dense<0.000000e+00> : vector<32x128xf32>
    %2 = tpu.matmul %0, %1, %cst {dimension_numbers = #tpu.dot_dimension_numbers<[1], [0], [0], [1], [0, 0, 1, 1], [], []>} : vector<32x2048xbf16>, vector<2048x128xbf16>, vector<32x128xf32> -> vector<32x128xf32>
    %cst_3 = arith.constant 0.000000e+00 : f32
    %3 = vector.broadcast %cst_3 : f32 to vector<32x128xf32>
    %4 = arith.maximumf %2, %3 : vector<32x128xf32>
    %5 = arith.truncf %4 : vector<32x128xf32> to vector<32x128xbf16>
    %c0_4 = arith.constant 0 : index
    %c0_5 = arith.constant 0 : index
    %6 = vector.load %arg3[%c0_4, %c0_5] : memref<128x128xbf16, #tpu.memory_space<vmem>>, vector<128x128xbf16>
    %cst_6 = arith.constant dense<0.000000e+00> : vector<32x128xf32>
    %7 = tpu.matmul %5, %6, %cst_6 {dimension_numbers = #tpu.dot_dimension_numbers<[1], [0], [0], [1], [0, 0, 1, 1], [], []>} : vector<32x128xbf16>, vector<128x128xbf16>, vector<32x128xf32> -> vector<32x128xf32>
    %cst_7 = arith.constant 0.000000e+00 : f32
    %8 = vector.broadcast %cst_7 : f32 to vector<32x128xf32>
    %9 = arith.maximumf %7, %8 : vector<32x128xf32>
    %10 = arith.truncf %9 : vector<32x128xf32> to vector<32x128xbf16>
    %c0_8 = arith.constant 0 : index
    %c0_9 = arith.constant 0 : index
    %11 = vector.load %arg4[%c0_8, %c0_9] : memref<128x384xbf16, #tpu.memory_space<vmem>>, vector<128x384xbf16>
    %cst_10 = arith.constant dense<0.000000e+00> : vector<32x384xf32>
    %12 = tpu.matmul %10, %11, %cst_10 {dimension_numbers = #tpu.dot_dimension_numbers<[1], [0], [0], [1], [0, 0, 1, 1], [], []>} : vector<32x128xbf16>, vector<128x384xbf16>, vector<32x384xf32> -> vector<32x384xf32>
    %cst_11 = arith.constant 0.000000e+00 : f32
    %13 = vector.broadcast %cst_11 : f32 to vector<32x384xf32>
    %14 = arith.maximumf %12, %13 : vector<32x384xf32>
    %15 = arith.truncf %14 : vector<32x384xf32> to vector<32x384xbf16>
    %16 = vector.extract_strided_slice %15 {offsets = [0, 0], sizes = [32, 128], strides = [1, 1]} : vector<32x384xbf16> to vector<32x128xbf16>
    %c0_12 = arith.constant 0 : index
    %c0_13 = arith.constant 0 : index
    %c0_14 = arith.constant 0 : index
    %17 = vector.load %arg5[%c0_12, %c0_13, %c0_14] : memref<3x128x128xbf16, #tpu.memory_space<vmem>>, vector<1x128x128xbf16>
    %18 = vector.shape_cast %17 : vector<1x128x128xbf16> to vector<128x128xbf16>
    %cst_15 = arith.constant dense<0.000000e+00> : vector<32x128xf32>
    %19 = tpu.matmul %16, %18, %cst_15 {dimension_numbers = #tpu.dot_dimension_numbers<[1], [0], [0], [1], [0, 0, 1, 1], [], []>} : vector<32x128xbf16>, vector<128x128xbf16>, vector<32x128xf32> -> vector<32x128xf32>
    %20 = vector.extract_strided_slice %15 {offsets = [0, 128], sizes = [32, 128], strides = [1, 1]} : vector<32x384xbf16> to vector<32x128xbf16>
    %c1 = arith.constant 1 : index
    %c0_16 = arith.constant 0 : index
    %c0_17 = arith.constant 0 : index
    %21 = vector.load %arg5[%c1, %c0_16, %c0_17] : memref<3x128x128xbf16, #tpu.memory_space<vmem>>, vector<1x128x128xbf16>
    %22 = vector.shape_cast %21 : vector<1x128x128xbf16> to vector<128x128xbf16>
    %cst_18 = arith.constant dense<0.000000e+00> : vector<32x128xf32>
    %23 = tpu.matmul %20, %22, %cst_18 {dimension_numbers = #tpu.dot_dimension_numbers<[1], [0], [0], [1], [0, 0, 1, 1], [], []>} : vector<32x128xbf16>, vector<128x128xbf16>, vector<32x128xf32> -> vector<32x128xf32>
    %24 = vector.extract_strided_slice %15 {offsets = [0, 256], sizes = [32, 128], strides = [1, 1]} : vector<32x384xbf16> to vector<32x128xbf16>
    %c2 = arith.constant 2 : index
    %c0_19 = arith.constant 0 : index
    %c0_20 = arith.constant 0 : index
    %25 = vector.load %arg5[%c2, %c0_19, %c0_20] : memref<3x128x128xbf16, #tpu.memory_space<vmem>>, vector<1x128x128xbf16>
    %26 = vector.shape_cast %25 : vector<1x128x128xbf16> to vector<128x128xbf16>
    %cst_21 = arith.constant dense<0.000000e+00> : vector<32x128xf32>
    %27 = tpu.matmul %24, %26, %cst_21 {dimension_numbers = #tpu.dot_dimension_numbers<[1], [0], [0], [1], [0, 0, 1, 1], [], []>} : vector<32x128xbf16>, vector<128x128xbf16>, vector<32x128xf32> -> vector<32x128xf32>
    %28 = tpu.concatenate %19, %23, %27 in 1 : vector<32x128xf32>, vector<32x128xf32>, vector<32x128xf32> -> vector<32x384xf32>
    %cst_22 = arith.constant 0.000000e+00 : f32
    %29 = vector.broadcast %cst_22 : f32 to vector<32x384xf32>
    %30 = arith.maximumf %28, %29 : vector<32x384xf32>
    %c0_23 = arith.constant 0 : index
    %c0_24 = arith.constant 0 : index
    %31 = vector.load %arg6[%c0_23, %c0_24] : memref<384x128xf32, #tpu.memory_space<vmem>>, vector<384x128xf32>
    %cst_25 = arith.constant dense<0.000000e+00> : vector<32x128xf32>
    %32 = tpu.matmul %30, %31, %cst_25 {dimension_numbers = #tpu.dot_dimension_numbers<[1], [0], [0], [1], [0, 0, 1, 1], [], []>} : vector<32x384xf32>, vector<384x128xf32>, vector<32x128xf32> -> vector<32x128xf32>
    %c0_26 = arith.constant 0 : index
    %c0_27 = arith.constant 0 : index
    %33 = vector.load %arg7[%c0_26, %c0_27] : memref<1x128xf32, #tpu.memory_space<vmem>>, vector<1x128xf32>
    %34 = vector.broadcast %33 : vector<1x128xf32> to vector<32x128xf32>
    %35 = arith.addf %32, %34 : vector<32x128xf32>
    %c0_28 = arith.constant 0 : index
    %c0_29 = arith.constant 0 : index
    %36 = vector.load %arg8[%c0_28, %c0_29] : memref<32x128xf32, #tpu.memory_space<vmem>>, vector<32x128xf32>
    tpu.vector_store %arg8[%c0_28, %c0_29], %35 {strides = array<i32>} : memref<32x128xf32, #tpu.memory_space<vmem>>, vector<32x128xf32>,
    return
  }
  func.func @transform_0(%arg0: i32) -> (i32, i32) {
    %c0_i32 = arith.constant 0 : i32
    %c0_i32_0 = arith.constant 0 : i32
    return %arg0, %c0_i32 : i32, i32
  }
  func.func @transform_1(%arg0: i32) -> (i32, i32) {
    %c0_i32 = arith.constant 0 : i32
    %c0_i32_0 = arith.constant 0 : i32
    %c0_i32_1 = arith.constant 0 : i32
    return %c0_i32, %c0_i32_0 : i32, i32
  }
  func.func @transform_2(%arg0: i32) -> (i32, i32) {
    %c0_i32 = arith.constant 0 : i32
    %c0_i32_0 = arith.constant 0 : i32
    %c0_i32_1 = arith.constant 0 : i32
    return %c0_i32, %c0_i32_0 : i32, i32
  }
  func.func @transform_3(%arg0: i32) -> (i32, i32) {
    %c0_i32 = arith.constant 0 : i32
    %c0_i32_0 = arith.constant 0 : i32
    %c0_i32_1 = arith.constant 0 : i32
    return %c0_i32, %c0_i32_0 : i32, i32
  }
  func.func @transform_4(%arg0: i32) -> (i32, i32, i32) {
    %c0_i32 = arith.constant 0 : i32
    %c0_i32_0 = arith.constant 0 : i32
    %c0_i32_1 = arith.constant 0 : i32
    %c0_i32_2 = arith.constant 0 : i32
    return %c0_i32, %c0_i32_0, %c0_i32_1 : i32, i32, i32
  }
  func.func @transform_5(%arg0: i32) -> (i32, i32) {
    %c0_i32 = arith.constant 0 : i32
    %c0_i32_0 = arith.constant 0 : i32
    %c0_i32_1 = arith.constant 0 : i32
    return %c0_i32, %c0_i32_0 : i32, i32
  }
  func.func @transform_6(%arg0: i32) -> (i32, i32) {
    %c0_i32 = arith.constant 0 : i32
    %c0_i32_0 = arith.constant 0 : i32
    %c0_i32_1 = arith.constant 0 : i32
    return %c0_i32, %c0_i32_0 : i32, i32
  }
  func.func @transform_7(%arg0: i32) -> (i32, i32) {
    %c0_i32 = arith.constant 0 : i32
    %c0_i32_0 = arith.constant 0 : i32
    return %arg0, %c0_i32 : i32, i32
  }
}

</mosaic_0001>

<llo_original>
// kernel: tpu_custom_call.1
$region0: #{tpu_custom_call.1}
  #allocation0 [shape = 'u32[]', space=smem, size = 0x4, offset = 0x4, fixed_abs, tag = 'smem constant byte address 0x4 - core index']
  #allocation1 [shape = 'u32[144,128]{1,0:T(1,128)}', space=vmem, size = 0x12000, scoped, tag = 'internal scratch']
  %s0 = inlined_call_operand.hbm [shape: bf16[32,2048], index: 0, kind: input, shape index: {}]
  %s1 = inlined_call_operand.hbm [shape: bf16[2048,128], index: 1, kind: input, shape index: {}]
  %s2 = inlined_call_operand.hbm [shape: bf16[128,128], index: 2, kind: input, shape index: {}]
  %s3 = inlined_call_operand.hbm [shape: bf16[128,384], index: 3, kind: input, shape index: {}]
  %s4 = inlined_call_operand.hbm [shape: bf16[3,128,128], index: 4, kind: input, shape index: {}]
  %s5 = inlined_call_operand.hbm [shape: f32[384,128], index: 5, kind: input, shape index: {}]
  %s6 = inlined_call_operand.vmem [shape: f32[1,128], index: 6, kind: input, shape index: {}]
  %s7 = inlined_call_operand.hbm [shape: f32[32,128], index: 7, kind: output, shape index: {}]
  %s8 = sld [smem:[#allocation0]]
  $region62: #{tpu_custom_call.1} parent=0
    _
  %s10 = ssub.s32 1, %s8
  %s11 = scalar_select 0, %s10, %s8
  $region1: #{tpu_custom_call.1} parent=0
    #allocation2 [shape = 'u8[131072]{0}', space=vmem, size = 0x20000, scoped, tag = 'input window, operand 0, single buffered']
    #allocation3 [shape = 's32[1]{0}', space=sflag, size = 0x4, scoped, tag = 'scoped memory for tpu_custom_call.1']
    #allocation4 [shape = 's32[1]{0}', space=sflag, size = 0x4, scoped, tag = 'scoped memory for tpu_custom_call.1']
    #allocation5 [shape = 'u8[524288]{0}', space=vmem, size = 0x80000, scoped, tag = 'input window, operand 1, single buffered']
    #allocation6 [shape = 's32[1]{0}', space=sflag, size = 0x4, scoped, tag = 'scoped memory for tpu_custom_call.1']
    #allocation7 [shape = 'u8[32768]{0}', space=vmem, size = 0x8000, scoped, tag = 'input window, operand 2, single buffered']
    #allocation8 [shape = 'u8[98304]{0}', space=vmem, size = 0x18000, scoped, tag = 'input window, operand 3, single buffered']
    #allocation9 [shape = 's32[1]{0}', space=sflag, size = 0x4, scoped, tag = 'scoped memory for tpu_custom_call.1']
    #allocation10 [shape = 'u8[98304]{0}', space=vmem, size = 0x18000, scoped, tag = 'input window, operand 4, single buffered']
    #allocation11 [shape = 'u8[196608]{0}', space=vmem, size = 0x30000, scoped, tag = 'input window, operand 5, single buffered']
    #allocation12 [shape = 's32[1]{0}', space=sflag, size = 0x4, scoped, tag = 'scoped memory for tpu_custom_call.1']
    #allocation13 [shape = 'u8[16384]{0}', space=vmem, size = 0x4000, scoped, tag = 'output window, operand 0, single buffered']
    %12 = vsyncpa [#allocation3], 0
    %13 = vsyncpa [#allocation6], 0
    %14 = vsyncpa [#allocation9], 0
    %15 = vsyncpa [#allocation12], 0
    %16 = vsyncpa [#allocation4], 0
    // Predicated region
    $region2: #{tpu_custom_call.1} parent=1 // pred_check
      _
    $region3: #{tpu_custom_call.1} parent=1 // pred_check_branch
      %18 = sbr.rel (0) target = $region5
    $region4: #{tpu_custom_call.1} parent=1 // pred_region
      %s20 = ssub.s32 4096, 4096
      %21 = vsyncadd [#allocation3], %s20
      %s22 = sshll.u32 [#allocation2], 4
      %s23 = int_to_ptr.vmem [resolvable:$true] %s22
      %28 = dma.hbm_to_vmem [thread:$0]  %s0, 4096, %s23, [#allocation3], 1024, 1024, 64
    $region5: #{tpu_custom_call.1} parent=1 // pred_fallthru
      _
    // Predicated region
    $region6: #{tpu_custom_call.1} parent=1 // pred_check
      _
    $region7: #{tpu_custom_call.1} parent=1 // pred_check_branch
      %30 = sbr.rel (0) target = $region9
    $region8: #{tpu_custom_call.1} parent=1 // pred_region
      %s32 = ssub.s32 16384, 16384
      %33 = vsyncadd [#allocation6], %s32
      %s34 = sshll.u32 [#allocation5], 4
      %s35 = int_to_ptr.vmem [resolvable:$true] %s34
      %40 = dma.hbm_to_vmem [thread:$0]  %s1, 16384, %s35, [#allocation6], 64, 64, 4
    $region9: #{tpu_custom_call.1} parent=1 // pred_fallthru
      _
    // Predicated region
    $region10: #{tpu_custom_call.1} parent=1 // pred_check
      _
    $region11: #{tpu_custom_call.1} parent=1 // pred_check_branch
      %42 = sbr.rel (0) target = $region13
    $region12: #{tpu_custom_call.1} parent=1 // pred_region
      %s44 = ssub.s32 1024, 1024
      %45 = vsyncadd [#allocation6], %s44
      %s46 = sshll.u32 [#allocation7], 4
      %s47 = int_to_ptr.vmem [resolvable:$true] %s46
      %52 = dma.hbm_to_vmem [thread:$0]  %s2, 1024, %s47, [#allocation6], 64, 64, 4
    $region13: #{tpu_custom_call.1} parent=1 // pred_fallthru
      _
    // Predicated region
    $region14: #{tpu_custom_call.1} parent=1 // pred_check
      _
    $region15: #{tpu_custom_call.1} parent=1 // pred_check_branch
      %54 = sbr.rel (0) target = $region17
    $region16: #{tpu_custom_call.1} parent=1 // pred_region
      %s56 = ssub.s32 3072, 3072
      %57 = vsyncadd [#allocation9], %s56
      %s58 = sshll.u32 [#allocation8], 4
      %s59 = int_to_ptr.vmem [resolvable:$true] %s58
      %64 = dma.hbm_to_vmem [thread:$0]  %s3, 3072, %s59, [#allocation9], 192, 192, 12
    $region17: #{tpu_custom_call.1} parent=1 // pred_fallthru
      _
    // Predicated region
    $region18: #{tpu_custom_call.1} parent=1 // pred_check
      _
    $region19: #{tpu_custom_call.1} parent=1 // pred_check_branch
      %66 = sbr.rel (0) target = $region21
    $region20: #{tpu_custom_call.1} parent=1 // pred_region
      %s68 = ssub.s32 3072, 3072
      %69 = vsyncadd [#allocation9], %s68
      %s70 = sshll.u32 [#allocation10], 4
      %s71 = int_to_ptr.vmem [resolvable:$true] %s70
      %76 = dma.hbm_to_vmem [thread:$0]  %s4, 3072, %s71, [#allocation9], 64, 64, 4
    $region21: #{tpu_custom_call.1} parent=1 // pred_fallthru
      _
    // Predicated region
    $region22: #{tpu_custom_call.1} parent=1 // pred_check
      _
    $region23: #{tpu_custom_call.1} parent=1 // pred_check_branch
      %78 = sbr.rel (0) target = $region25
    $region24: #{tpu_custom_call.1} parent=1 // pred_region
      %s80 = ssub.s32 6144, 6144
      %81 = vsyncadd [#allocation12], %s80
      %s82 = sshll.u32 [#allocation11], 4
      %s83 = int_to_ptr.vmem [resolvable:$true] %s82
      %88 = dma.hbm_to_vmem [thread:$0]  %s5, 6144, %s83, [#allocation12], 128, 128, 8
    $region25: #{tpu_custom_call.1} parent=1 // pred_fallthru
      _
    // Predicated region
    $region26: #{tpu_custom_call.1} parent=1 // pred_check
      _
    $region27: #{tpu_custom_call.1} parent=1 // pred_check_branch
      %90 = sbr.rel (0) target = $region29
    $region28: #{tpu_custom_call.1} parent=1 // pred_region
      _
    $region29: #{tpu_custom_call.1} parent=1 // pred_fallthru
      _
    // Predicated region
    $region30: #{tpu_custom_call.1} parent=1 // pred_check
      _
    $region31: #{tpu_custom_call.1} parent=1 // pred_check_branch
      %92 = sbr.rel (0) target = $region33
    $region32: #{tpu_custom_call.1} parent=1 // pred_region
      %93 = dma.done [#allocation3], 4096
    $region33: #{tpu_custom_call.1} parent=1 // pred_fallthru
      _
    // Predicated region
    $region34: #{tpu_custom_call.1} parent=1 // pred_check
      _
    $region35: #{tpu_custom_call.1} parent=1 // pred_check_branch
      %95 = sbr.rel (0) target = $region37
    $region36: #{tpu_custom_call.1} parent=1 // pred_region
      %96 = dma.done [#allocation6], 16384
    $region37: #{tpu_custom_call.1} parent=1 // pred_fallthru
      _
    // Predicated region
    $region38: #{tpu_custom_call.1} parent=1 // pred_check
      _
    $region39: #{tpu_custom_call.1} parent=1 // pred_check_branch
      %98 = sbr.rel (0) target = $region41
    $region40: #{tpu_custom_call.1} parent=1 // pred_region
      %99 = dma.done [#allocation6], 1024
    $region41: #{tpu_custom_call.1} parent=1 // pred_fallthru
      _
    // Predicated region
    $region42: #{tpu_custom_call.1} parent=1 // pred_check
      _
    $region43: #{tpu_custom_call.1} parent=1 // pred_check_branch
      %101 = sbr.rel (0) target = $region45
    $region44: #{tpu_custom_call.1} parent=1 // pred_region
      %102 = dma.done [#allocation9], 3072
    $region45: #{tpu_custom_call.1} parent=1 // pred_fallthru
      _
    // Predicated region
    $region46: #{tpu_custom_call.1} parent=1 // pred_check
      _
    $region47: #{tpu_custom_call.1} parent=1 // pred_check_branch
      %104 = sbr.rel (0) target = $region49
    $region48: #{tpu_custom_call.1} parent=1 // pred_region
      %105 = dma.done [#allocation9], 3072
    $region49: #{tpu_custom_call.1} parent=1 // pred_fallthru
      _
    // Predicated region
    $region50: #{tpu_custom_call.1} parent=1 // pred_check
      _
    $region51: #{tpu_custom_call.1} parent=1 // pred_check_branch
      %107 = sbr.rel (0) target = $region53
    $region52: #{tpu_custom_call.1} parent=1 // pred_region
      %108 = dma.done [#allocation12], 6144
    $region53: #{tpu_custom_call.1} parent=1 // pred_fallthru
      _
    %v110 = vld [vmem:[#allocation2] sm:$0xff]
    %v111 = vld [vmem:[#allocation2 + $0x8] sm:$0xff]
    %v112 = vld [vmem:[#allocation2 + $0x10] sm:$0xff]
    %v113 = vld [vmem:[#allocation2 + $0x18] sm:$0xff]
    %v114 = vld [vmem:[#allocation2 + $0x20] sm:$0xff]
    %v115 = vld [vmem:[#allocation2 + $0x28] sm:$0xff]
    %v116 = vld [vmem:[#allocation2 + $0x30] sm:$0xff]
    %v117 = vld [vmem:[#allocation2 + $0x38] sm:$0xff]
    %v118 = vld [vmem:[#allocation2 + $0x40] sm:$0xff]
    %v119 = vld [vmem:[#allocation2 + $0x48] sm:$0xff]
    %v120 = vld [vmem:[#allocation2 + $0x50] sm:$0xff]
    %v121 = vld [vmem:[#allocation2 + $0x58] sm:$0xff]
    %v122 = vld [vmem:[#allocation2 + $0x60] sm:$0xff]
    %v123 = vld [vmem:[#allocation2 + $0x68] sm:$0xff]
    %v124 = vld [vmem:[#allocation2 + $0x70] sm:$0xff]
    %v125 = vld [vmem:[#allocation2 + $0x78] sm:$0xff]
    %v126 = vld [vmem:[#allocation2 + $0x80] sm:$0xff]
    %v127 = vld [vmem:[#allocation2 + $0x88] sm:$0xff]
    %v128 = vld [vmem:[#allocation2 + $0x90] sm:$0xff]
    %v129 = vld [vmem:[#allocation2 + $0x98] sm:$0xff]
    %v130 = vld [vmem:[#allocation2 + $0xa0] sm:$0xff]
    %v131 = vld [vmem:[#allocation2 + $0xa8] sm:$0xff]
    %v132 = vld [vmem:[#allocation2 + $0xb0] sm:$0xff]
    %v133 = vld [vmem:[#allocation2 + $0xb8] sm:$0xff]
    %v134 = vld [vmem:[#allocation2 + $0xc0] sm:$0xff]
    %v135 = vld [vmem:[#allocation2 + $0xc8] sm:$0xff]
    %v136 = vld [vmem:[#allocation2 + $0xd0] sm:$0xff]
    %v137 = vld [vmem:[#allocation2 + $0xd8] sm:$0xff]
    %v138 = vld [vmem:[#allocation2 + $0xe0] sm:$0xff]
    %v139 = vld [vmem:[#allocation2 + $0xe8] sm:$0xff]
    %v140 = vld [vmem:[#allocation2 + $0xf0] sm:$0xff]
    %v141 = vld [vmem:[#allocation2 + $0xf8] sm:$0xff]
    %v142 = vld [vmem:[#allocation5] sm:$0xf]
    %v143 = vld [vmem:[#allocation5 + $0x4] sm:$0xf]
    %v144 = vld [vmem:[#allocation5 + $0x8] sm:$0xf]
    %v145 = vld [vmem:[#allocation5 + $0xc] sm:$0xf]
    %v146 = vld [vmem:[#allocation5 + $0x10] sm:$0xf]
    %v147 = vld [vmem:[#allocation5 + $0x14] sm:$0xf]
    %v148 = vld [vmem:[#allocation5 + $0x18] sm:$0xf]
    %v149 = vld [vmem:[#allocation5 + $0x1c] sm:$0xf]
    %v150 = vld [vmem:[#allocation5 + $0x20] sm:$0xf]
    %v151 = vld [vmem:[#allocation5 + $0x24] sm:$0xf]
    %v152 = vld [vmem:[#allocation5 + $0x28] sm:$0xf]
    %v153 = vld [vmem:[#allocation5 + $0x2c] sm:$0xf]
    %v154 = vld [vmem:[#allocation5 + $0x30] sm:$0xf]
    %v155 = vld [vmem:[#allocation5 + $0x34] sm:$0xf]
    %v156 = vld [vmem:[#allocation5 + $0x38] sm:$0xf]
    %v157 = vld [vmem:[#allocation5 + $0x3c] sm:$0xf]
    %v158 = vld [vmem:[#allocation5 + $0x40] sm:$0xf]
    %v159 = vld [vmem:[#allocation5 + $0x44] sm:$0xf]
    %v160 = vld [vmem:[#allocation5 + $0x48] sm:$0xf]
    %v161 = vld [vmem:[#allocation5 + $0x4c] sm:$0xf]
    %v162 = vld [vmem:[#allocation5 + $0x50] sm:$0xf]
    %v163 = vld [vmem:[#allocation5 + $0x54] sm:$0xf]
    %v164 = vld [vmem:[#allocation5 + $0x58] sm:$0xf]
    %v165 = vld [vmem:[#allocation5 + $0x5c] sm:$0xf]
    %v166 = vld [vmem:[#allocation5 + $0x60] sm:$0xf]
    %v167 = vld [vmem:[#allocation5 + $0x64] sm:$0xf]
    %v168 = vld [vmem:[#allocation5 + $0x68] sm:$0xf]
    %v169 = vld [vmem:[#allocation5 + $0x6c] sm:$0xf]
    %v170 = vld [vmem:[#allocation5 + $0x70] sm:$0xf]
    %v171 = vld [vmem:[#allocation5 + $0x74] sm:$0xf]
    %v172 = vld [vmem:[#allocation5 + $0x78] sm:$0xf]
    %v173 = vld [vmem:[#allocation5 + $0x7c] sm:$0xf]
    %v174 = vld [vmem:[#allocation5 + $0x80] sm:$0xf]
    %v175 = vld [vmem:[#allocation5 + $0x84] sm:$0xf]
    %v176 = vld [vmem:[#allocation5 + $0x88] sm:$0xf]
    %v177 = vld [vmem:[#allocation5 + $0x8c] sm:$0xf]
    %v178 = vld [vmem:[#allocation5 + $0x90] sm:$0xf]
    %v179 = vld [vmem:[#allocation5 + $0x94] sm:$0xf]
    %v180 = vld [vmem:[#allocation5 + $0x98] sm:$0xf]
    %v181 = vld [vmem:[#allocation5 + $0x9c] sm:$0xf]
    %v182 = vld [vmem:[#allocation5 + $0xa0] sm:$0xf]
    %v183 = vld [vmem:[#allocation5 + $0xa4] sm:$0xf]
    %v184 = vld [vmem:[#allocation5 + $0xa8] sm:$0xf]
    %v185 = vld [vmem:[#allocation5 + $0xac] sm:$0xf]
    %v186 = vld [vmem:[#allocation5 + $0xb0] sm:$0xf]
    %v187 = vld [vmem:[#allocation5 + $0xb4] sm:$0xf]
    %v188 = vld [vmem:[#allocation5 + $0xb8] sm:$0xf]
    %v189 = vld [vmem:[#allocation5 + $0xbc] sm:$0xf]
    %v190 = vld [vmem:[#allocation5 + $0xc0] sm:$0xf]
    %v191 = vld [vmem:[#allocation5 + $0xc4] sm:$0xf]
    %v192 = vld [vmem:[#allocation5 + $0xc8] sm:$0xf]
    %v193 = vld [vmem:[#allocation5 + $0xcc] sm:$0xf]
    %v194 = vld [vmem:[#allocation5 + $0xd0] sm:$0xf]
    %v195 = vld [vmem:[#allocation5 + $0xd4] sm:$0xf]
    %v196 = vld [vmem:[#allocation5 + $0xd8] sm:$0xf]
    %v197 = vld [vmem:[#allocation5 + $0xdc] sm:$0xf]
    %v198 = vld [vmem:[#allocation5 + $0xe0] sm:$0xf]
    %v199 = vld [vmem:[#allocation5 + $0xe4] sm:$0xf]
    %v200 = vld [vmem:[#allocation5 + $0xe8] sm:$0xf]
    %v201 = vld [vmem:[#allocation5 + $0xec] sm:$0xf]
    %v202 = vld [vmem:[#allocation5 + $0xf0] sm:$0xf]
    %v203 = vld [vmem:[#allocation5 + $0xf4] sm:$0xf]
    %v204 = vld [vmem:[#allocation5 + $0xf8] sm:$0xf]
    %v205 = vld [vmem:[#allocation5 + $0xfc] sm:$0xf]
    %v206 = vld [vmem:[#allocation5 + $0x100] sm:$0xf]
    %v207 = vld [vmem:[#allocation5 + $0x104] sm:$0xf]
    %v208 = vld [vmem:[#allocation5 + $0x108] sm:$0xf]
    %v209 = vld [vmem:[#allocation5 + $0x10c] sm:$0xf]
    %v210 = vld [vmem:[#allocation5 + $0x110] sm:$0xf]
    %v211 = vld [vmem:[#allocation5 + $0x114] sm:$0xf]
    %v212 = vld [vmem:[#allocation5 + $0x118] sm:$0xf]
    %v213 = vld [vmem:[#allocation5 + $0x11c] sm:$0xf]
    %v214 = vld [vmem:[#allocation5 + $0x120] sm:$0xf]
    %v215 = vld [vmem:[#allocation5 + $0x124] sm:$0xf]
    %v216 = vld [vmem:[#allocation5 + $0x128] sm:$0xf]
    %v217 = vld [vmem:[#allocation5 + $0x12c] sm:$0xf]
    %v218 = vld [vmem:[#allocation5 + $0x130] sm:$0xf]
    %v219 = vld [vmem:[#allocation5 + $0x134] sm:$0xf]
    %v220 = vld [vmem:[#allocation5 + $0x138] sm:$0xf]
    %v221 = vld [vmem:[#allocation5 + $0x13c] sm:$0xf]
    %v222 = vld [vmem:[#allocation5 + $0x140] sm:$0xf]
    %v223 = vld [vmem:[#allocation5 + $0x144] sm:$0xf]
    %v224 = vld [vmem:[#allocation5 + $0x148] sm:$0xf]
    %v225 = vld [vmem:[#allocation5 + $0x14c] sm:$0xf]
    %v226 = vld [vmem:[#allocation5 + $0x150] sm:$0xf]
    %v227 = vld [vmem:[#allocation5 + $0x154] sm:$0xf]
    %v228 = vld [vmem:[#allocation5 + $0x158] sm:$0xf]
    %v229 = vld [vmem:[#allocation5 + $0x15c] sm:$0xf]
    %v230 = vld [vmem:[#allocation5 + $0x160] sm:$0xf]
    %v231 = vld [vmem:[#allocation5 + $0x164] sm:$0xf]
    %v232 = vld [vmem:[#allocation5 + $0x168] sm:$0xf]
    %v233 = vld [vmem:[#allocation5 + $0x16c] sm:$0xf]
    %v234 = vld [vmem:[#allocation5 + $0x170] sm:$0xf]
    %v235 = vld [vmem:[#allocation5 + $0x174] sm:$0xf]
    %v236 = vld [vmem:[#allocation5 + $0x178] sm:$0xf]
    %v237 = vld [vmem:[#allocation5 + $0x17c] sm:$0xf]
    %v238 = vld [vmem:[#allocation5 + $0x180] sm:$0xf]
    %v239 = vld [vmem:[#allocation5 + $0x184] sm:$0xf]
    %v240 = vld [vmem:[#allocation5 + $0x188] sm:$0xf]
    %v241 = vld [vmem:[#allocation5 + $0x18c] sm:$0xf]
    %v242 = vld [vmem:[#allocation5 + $0x190] sm:$0xf]
    %v243 = vld [vmem:[#allocation5 + $0x194] sm:$0xf]
    %v244 = vld [vmem:[#allocation5 + $0x198] sm:$0xf]
    %v245 = vld [vmem:[#allocation5 + $0x19c] sm:$0xf]
    %v246 = vld [vmem:[#allocation5 + $0x1a0] sm:$0xf]
    %v247 = vld [vmem:[#allocation5 + $0x1a4] sm:$0xf]
    %v248 = vld [vmem:[#allocation5 + $0x1a8] sm:$0xf]
    %v249 = vld [vmem:[#allocation5 + $0x1ac] sm:$0xf]
    %v250 = vld [vmem:[#allocation5 + $0x1b0] sm:$0xf]
    %v251 = vld [vmem:[#allocation5 + $0x1b4] sm:$0xf]
    %v252 = vld [vmem:[#allocation5 + $0x1b8] sm:$0xf]
    %v253 = vld [vmem:[#allocation5 + $0x1bc] sm:$0xf]
    %v254 = vld [vmem:[#allocation5 + $0x1c0] sm:$0xf]
    %v255 = vld [vmem:[#allocation5 + $0x1c4] sm:$0xf]
    %v256 = vld [vmem:[#allocation5 + $0x1c8] sm:$0xf]
    %v257 = vld [vmem:[#allocation5 + $0x1cc] sm:$0xf]
    %v258 = vld [vmem:[#allocation5 + $0x1d0] sm:$0xf]
    %v259 = vld [vmem:[#allocation5 + $0x1d4] sm:$0xf]
    %v260 = vld [vmem:[#allocation5 + $0x1d8] sm:$0xf]
    %v261 = vld [vmem:[#allocation5 + $0x1dc] sm:$0xf]
    %v262 = vld [vmem:[#allocation5 + $0x1e0] sm:$0xf]
    %v263 = vld [vmem:[#allocation5 + $0x1e4] sm:$0xf]
    %v264 = vld [vmem:[#allocation5 + $0x1e8] sm:$0xf]
    %v265 = vld [vmem:[#allocation5 + $0x1ec] sm:$0xf]
    %v266 = vld [vmem:[#allocation5 + $0x1f0] sm:$0xf]
    %v267 = vld [vmem:[#allocation5 + $0x1f4] sm:$0xf]
    %v268 = vld [vmem:[#allocation5 + $0x1f8] sm:$0xf]
    %v269 = vld [vmem:[#allocation5 + $0x1fc] sm:$0xf]
    %v270 = vld [vmem:[#allocation5 + $0x200] sm:$0xf]
    %v271 = vld [vmem:[#allocation5 + $0x204] sm:$0xf]
    %v272 = vld [vmem:[#allocation5 + $0x208] sm:$0xf]
    %v273 = vld [vmem:[#allocation5 + $0x20c] sm:$0xf]
    %v274 = vld [vmem:[#allocation5 + $0x210] sm:$0xf]
    %v275 = vld [vmem:[#allocation5 + $0x214] sm:$0xf]
    %v276 = vld [vmem:[#allocation5 + $0x218] sm:$0xf]
    %v277 = vld [vmem:[#allocation5 + $0x21c] sm:$0xf]
    %v278 = vld [vmem:[#allocation5 + $0x220] sm:$0xf]
    %v279 = vld [vmem:[#allocation5 + $0x224] sm:$0xf]
    %v280 = vld [vmem:[#allocation5 + $0x228] sm:$0xf]
    %v281 = vld [vmem:[#allocation5 + $0x22c] sm:$0xf]
    %v282 = vld [vmem:[#allocation5 + $0x230] sm:$0xf]
    %v283 = vld [vmem:[#allocation5 + $0x234] sm:$0xf]
    %v284 = vld [vmem:[#allocation5 + $0x238] sm:$0xf]
    %v285 = vld [vmem:[#allocation5 + $0x23c] sm:$0xf]
    %v286 = vld [vmem:[#allocation5 + $0x240] sm:$0xf]
    %v287 = vld [vmem:[#allocation5 + $0x244] sm:$0xf]
    %v288 = vld [vmem:[#allocation5 + $0x248] sm:$0xf]
    %v289 = vld [vmem:[#allocation5 + $0x24c] sm:$0xf]
    %v290 = vld [vmem:[#allocation5 + $0x250] sm:$0xf]
    %v291 = vld [vmem:[#allocation5 + $0x254] sm:$0xf]
    %v292 = vld [vmem:[#allocation5 + $0x258] sm:$0xf]
    %v293 = vld [vmem:[#allocation5 + $0x25c] sm:$0xf]
    %v294 = vld [vmem:[#allocation5 + $0x260] sm:$0xf]
    %v295 = vld [vmem:[#allocation5 + $0x264] sm:$0xf]
    %v296 = vld [vmem:[#allocation5 + $0x268] sm:$0xf]
    %v297 = vld [vmem:[#allocation5 + $0x26c] sm:$0xf]
    %v298 = vld [vmem:[#allocation5 + $0x270] sm:$0xf]
    %v299 = vld [vmem:[#allocation5 + $0x274] sm:$0xf]
    %v300 = vld [vmem:[#allocation5 + $0x278] sm:$0xf]
    %v301 = vld [vmem:[#allocation5 + $0x27c] sm:$0xf]
    %v302 = vld [vmem:[#allocation5 + $0x280] sm:$0xf]
    %v303 = vld [vmem:[#allocation5 + $0x284] sm:$0xf]
    %v304 = vld [vmem:[#allocation5 + $0x288] sm:$0xf]
    %v305 = vld [vmem:[#allocation5 + $0x28c] sm:$0xf]
    %v306 = vld [vmem:[#allocation5 + $0x290] sm:$0xf]
    %v307 = vld [vmem:[#allocation5 + $0x294] sm:$0xf]
    %v308 = vld [vmem:[#allocation5 + $0x298] sm:$0xf]
    %v309 = vld [vmem:[#allocation5 + $0x29c] sm:$0xf]
    %v310 = vld [vmem:[#allocation5 + $0x2a0] sm:$0xf]
    %v311 = vld [vmem:[#allocation5 + $0x2a4] sm:$0xf]
    %v312 = vld [vmem:[#allocation5 + $0x2a8] sm:$0xf]
    %v313 = vld [vmem:[#allocation5 + $0x2ac] sm:$0xf]
    %v314 = vld [vmem:[#allocation5 + $0x2b0] sm:$0xf]
    %v315 = vld [vmem:[#allocation5 + $0x2b4] sm:$0xf]
    %v316 = vld [vmem:[#allocation5 + $0x2b8] sm:$0xf]
    %v317 = vld [vmem:[#allocation5 + $0x2bc] sm:$0xf]
    %v318 = vld [vmem:[#allocation5 + $0x2c0] sm:$0xf]
    %v319 = vld [vmem:[#allocation5 + $0x2c4] sm:$0xf]
    %v320 = vld [vmem:[#allocation5 + $0x2c8] sm:$0xf]
    %v321 = vld [vmem:[#allocation5 + $0x2cc] sm:$0xf]
    %v322 = vld [vmem:[#allocation5 + $0x2d0] sm:$0xf]
    %v323 = vld [vmem:[#allocation5 + $0x2d4] sm:$0xf]
    %v324 = vld [vmem:[#allocation5 + $0x2d8] sm:$0xf]
    %v325 = vld [vmem:[#allocation5 + $0x2dc] sm:$0xf]
    %v326 = vld [vmem:[#allocation5 + $0x2e0] sm:$0xf]
    %v327 = vld [vmem:[#allocation5 + $0x2e4] sm:$0xf]
    %v328 = vld [vmem:[#allocation5 + $0x2e8] sm:$0xf]
    %v329 = vld [vmem:[#allocation5 + $0x2ec] sm:$0xf]
    %v330 = vld [vmem:[#allocation5 + $0x2f0] sm:$0xf]
    %v331 = vld [vmem:[#allocation5 + $0x2f4] sm:$0xf]
    %v332 = vld [vmem:[#allocation5 + $0x2f8] sm:$0xf]
    %v333 = vld [vmem:[#allocation5 + $0x2fc] sm:$0xf]
    %v334 = vld [vmem:[#allocation5 + $0x300] sm:$0xf]
    %v335 = vld [vmem:[#allocation5 + $0x304] sm:$0xf]
    %v336 = vld [vmem:[#allocation5 + $0x308] sm:$0xf]
    %v337 = vld [vmem:[#allocation5 + $0x30c] sm:$0xf]
    %v338 = vld [vmem:[#allocation5 + $0x310] sm:$0xf]
    %v339 = vld [vmem:[#allocation5 + $0x314] sm:$0xf]
    %v340 = vld [vmem:[#allocation5 + $0x318] sm:$0xf]
    %v341 = vld [vmem:[#allocation5 + $0x31c] sm:$0xf]
    %v342 = vld [vmem:[#allocation5 + $0x320] sm:$0xf]
    %v343 = vld [vmem:[#allocation5 + $0x324] sm:$0xf]
    %v344 = vld [vmem:[#allocation5 + $0x328] sm:$0xf]
    %v345 = vld [vmem:[#allocation5 + $0x32c] sm:$0xf]
    %v346 = vld [vmem:[#allocation5 + $0x330] sm:$0xf]
    %v347 = vld [vmem:[#allocation5 + $0x334] sm:$0xf]
    %v348 = vld [vmem:[#allocation5 + $0x338] sm:$0xf]
    %v349 = vld [vmem:[#allocation5 + $0x33c] sm:$0xf]
    %v350 = vld [vmem:[#allocation5 + $0x340] sm:$0xf]
    %v351 = vld [vmem:[#allocation5 + $0x344] sm:$0xf]
    %v352 = vld [vmem:[#allocation5 + $0x348] sm:$0xf]
    %v353 = vld [vmem:[#allocation5 + $0x34c] sm:$0xf]
    %v354 = vld [vmem:[#allocation5 + $0x350] sm:$0xf]
    %v355 = vld [vmem:[#allocation5 + $0x354] sm:$0xf]
    %v356 = vld [vmem:[#allocation5 + $0x358] sm:$0xf]
    %v357 = vld [vmem:[#allocation5 + $0x35c] sm:$0xf]
    %v358 = vld [vmem:[#allocation5 + $0x360] sm:$0xf]
    %v359 = vld [vmem:[#allocation5 + $0x364] sm:$0xf]
    %v360 = vld [vmem:[#allocation5 + $0x368] sm:$0xf]
    %v361 = vld [vmem:[#allocation5 + $0x36c] sm:$0xf]
    %v362 = vld [vmem:[#allocation5 + $0x370] sm:$0xf]
    %v363 = vld [vmem:[#allocation5 + $0x374] sm:$0xf]
    %v364 = vld [vmem:[#allocation5 + $0x378] sm:$0xf]
    %v365 = vld [vmem:[#allocation5 + $0x37c] sm:$0xf]
    %v366 = vld [vmem:[#allocation5 + $0x380] sm:$0xf]
    %v367 = vld [vmem:[#allocation5 + $0x384] sm:$0xf]
    %v368 = vld [vmem:[#allocation5 + $0x388] sm:$0xf]
    %v369 = vld [vmem:[#allocation5 + $0x38c] sm:$0xf]
    %v370 = vld [vmem:[#allocation5 + $0x390] sm:$0xf]
    %v371 = vld [vmem:[#allocation5 + $0x394] sm:$0xf]
    %v372 = vld [vmem:[#allocation5 + $0x398] sm:$0xf]
    %v373 = vld [vmem:[#allocation5 + $0x39c] sm:$0xf]
    %v374 = vld [vmem:[#allocation5 + $0x3a0] sm:$0xf]
    %v375 = vld [vmem:[#allocation5 + $0x3a4] sm:$0xf]
    %v376 = vld [vmem:[#allocation5 + $0x3a8] sm:$0xf]
    %v377 = vld [vmem:[#allocation5 + $0x3ac] sm:$0xf]
    %v378 = vld [vmem:[#allocation5 + $0x3b0] sm:$0xf]
    %v379 = vld [vmem:[#allocation5 + $0x3b4] sm:$0xf]
    %v380 = vld [vmem:[#allocation5 + $0x3b8] sm:$0xf]
    %v381 = vld [vmem:[#allocation5 + $0x3bc] sm:$0xf]
    %v382 = vld [vmem:[#allocation5 + $0x3c0] sm:$0xf]
    %v383 = vld [vmem:[#allocation5 + $0x3c4] sm:$0xf]
    %v384 = vld [vmem:[#allocation5 + $0x3c8] sm:$0xf]
    %v385 = vld [vmem:[#allocation5 + $0x3cc] sm:$0xf]
    %v386 = vld [vmem:[#allocation5 + $0x3d0] sm:$0xf]
    %v387 = vld [vmem:[#allocation5 + $0x3d4] sm:$0xf]
    %v388 = vld [vmem:[#allocation5 + $0x3d8] sm:$0xf]
    %v389 = vld [vmem:[#allocation5 + $0x3dc] sm:$0xf]
    %v390 = vld [vmem:[#allocation5 + $0x3e0] sm:$0xf]
    %v391 = vld [vmem:[#allocation5 + $0x3e4] sm:$0xf]
    %v392 = vld [vmem:[#allocation5 + $0x3e8] sm:$0xf]
    %v393 = vld [vmem:[#allocation5 + $0x3ec] sm:$0xf]
    %v394 = vld [vmem:[#allocation5 + $0x3f0] sm:$0xf]
    %v395 = vld [vmem:[#allocation5 + $0x3f4] sm:$0xf]
    %v396 = vld [vmem:[#allocation5 + $0x3f8] sm:$0xf]
    %v397 = vld [vmem:[#allocation5 + $0x3fc] sm:$0xf]
    %v430 = vunpack.c.l.b16 %v110
    %v431 = vunpack.c.h.b16 %v110
    %v432 = vunpack.c.l.b16 %v111
    %v433 = vunpack.c.h.b16 %v111
    %v434 = vunpack.c.l.b16 %v112
    %v435 = vunpack.c.h.b16 %v112
    %v436 = vunpack.c.l.b16 %v113
    %v437 = vunpack.c.h.b16 %v113
    %v438 = vunpack.c.l.b16 %v114
    %v439 = vunpack.c.h.b16 %v114
    %v440 = vunpack.c.l.b16 %v115
    %v441 = vunpack.c.h.b16 %v115
    %v442 = vunpack.c.l.b16 %v116
    %v443 = vunpack.c.h.b16 %v116
    %v444 = vunpack.c.l.b16 %v117
    %v445 = vunpack.c.h.b16 %v117
    %v446 = vunpack.c.l.b16 %v118
    %v447 = vunpack.c.h.b16 %v118
    %v448 = vunpack.c.l.b16 %v119
    %v449 = vunpack.c.h.b16 %v119
    %v450 = vunpack.c.l.b16 %v120
    %v451 = vunpack.c.h.b16 %v120
    %v452 = vunpack.c.l.b16 %v121
    %v453 = vunpack.c.h.b16 %v121
    %v454 = vunpack.c.l.b16 %v122
    %v455 = vunpack.c.h.b16 %v122
    %v456 = vunpack.c.l.b16 %v123
    %v457 = vunpack.c.h.b16 %v123
    %v458 = vunpack.c.l.b16 %v124
    %v459 = vunpack.c.h.b16 %v124
    %v460 = vunpack.c.l.b16 %v125
    %v461 = vunpack.c.h.b16 %v125
    %v462 = vunpack.c.l.b16 %v126
    %v463 = vunpack.c.h.b16 %v126
    %v464 = vunpack.c.l.b16 %v127
    %v465 = vunpack.c.h.b16 %v127
    %v466 = vunpack.c.l.b16 %v128
    %v467 = vunpack.c.h.b16 %v128
    %v468 = vunpack.c.l.b16 %v129
    %v469 = vunpack.c.h.b16 %v129
    %v470 = vunpack.c.l.b16 %v130
    %v471 = vunpack.c.h.b16 %v130
    %v472 = vunpack.c.l.b16 %v131
    %v473 = vunpack.c.h.b16 %v131
    %v474 = vunpack.c.l.b16 %v132
    %v475 = vunpack.c.h.b16 %v132
    %v476 = vunpack.c.l.b16 %v133
    %v477 = vunpack.c.h.b16 %v133
    %v478 = vunpack.c.l.b16 %v134
    %v479 = vunpack.c.h.b16 %v134
    %v480 = vunpack.c.l.b16 %v135
    %v481 = vunpack.c.h.b16 %v135
    %v482 = vunpack.c.l.b16 %v136
    %v483 = vunpack.c.h.b16 %v136
    %v484 = vunpack.c.l.b16 %v137
    %v485 = vunpack.c.h.b16 %v137
    %v486 = vunpack.c.l.b16 %v138
    %v487 = vunpack.c.h.b16 %v138
    %v488 = vunpack.c.l.b16 %v139
    %v489 = vunpack.c.h.b16 %v139
    %v490 = vunpack.c.l.b16 %v140
    %v491 = vunpack.c.h.b16 %v140
    %v492 = vunpack.c.l.b16 %v141
    %v493 = vunpack.c.h.b16 %v141
    %v494 = vpack.c.b16 %v446, %v430
    %v495 = vpack.c.b16 %v447, %v431
    %v496 = vpack.c.b16 %v448, %v432
    %v497 = vpack.c.b16 %v449, %v433
    %v498 = vpack.c.b16 %v450, %v434
    %v499 = vpack.c.b16 %v451, %v435
    %v500 = vpack.c.b16 %v452, %v436
    %v501 = vpack.c.b16 %v453, %v437
    %v502 = vpack.c.b16 %v454, %v438
    %v503 = vpack.c.b16 %v455, %v439
    %v504 = vpack.c.b16 %v456, %v440
    %v505 = vpack.c.b16 %v457, %v441
    %v506 = vpack.c.b16 %v458, %v442
    %v507 = vpack.c.b16 %v459, %v443
    %v508 = vpack.c.b16 %v460, %v444
    %v509 = vpack.c.b16 %v461, %v445
    %v510 = vpack.c.b16 %v478, %v462
    %v511 = vpack.c.b16 %v479, %v463
    %v512 = vpack.c.b16 %v480, %v464
    %v513 = vpack.c.b16 %v481, %v465
    %v514 = vpack.c.b16 %v482, %v466
    %v515 = vpack.c.b16 %v483, %v467
    %v516 = vpack.c.b16 %v484, %v468
    %v517 = vpack.c.b16 %v485, %v469
    %v518 = vpack.c.b16 %v486, %v470
    %v519 = vpack.c.b16 %v487, %v471
    %v520 = vpack.c.b16 %v488, %v472
    %v521 = vpack.c.b16 %v489, %v473
    %v522 = vpack.c.b16 %v490, %v474
    %v523 = vpack.c.b16 %v491, %v475
    %v524 = vpack.c.b16 %v492, %v476
    %v525 = vpack.c.b16 %v493, %v477
    %v814 = vunpack.c.l.b16 %v142
    %v815 = vunpack.c.l.b16 %v143
    %v816 = vunpack.c.l.b16 %v144
    %v817 = vunpack.c.l.b16 %v145
    %v818 = vunpack.c.l.b16 %v146
    %v819 = vunpack.c.l.b16 %v147
    %v820 = vunpack.c.l.b16 %v148
    %v821 = vunpack.c.l.b16 %v149
    %v822 = vunpack.c.l.b16 %v150
    %v823 = vunpack.c.l.b16 %v151
    %v824 = vunpack.c.l.b16 %v152
    %v825 = vunpack.c.l.b16 %v153
    %v826 = vunpack.c.l.b16 %v154
    %v827 = vunpack.c.l.b16 %v155
    %v828 = vunpack.c.l.b16 %v156
    %v829 = vunpack.c.l.b16 %v157
    %v830 = vunpack.c.l.b16 %v158
    %v831 = vunpack.c.l.b16 %v159
    %v832 = vunpack.c.l.b16 %v160
    %v833 = vunpack.c.l.b16 %v161
    %v834 = vunpack.c.l.b16 %v162
    %v835 = vunpack.c.l.b16 %v163
    %v836 = vunpack.c.l.b16 %v164
    %v837 = vunpack.c.l.b16 %v165
    %v838 = vunpack.c.l.b16 %v166
    %v839 = vunpack.c.l.b16 %v167
    %v840 = vunpack.c.l.b16 %v168
    %v841 = vunpack.c.l.b16 %v169
    %v842 = vunpack.c.l.b16 %v170
    %v843 = vunpack.c.l.b16 %v171
    %v844 = vunpack.c.l.b16 %v172
    %v845 = vunpack.c.l.b16 %v173
    %v846 = vunpack.c.l.b16 %v174
    %v847 = vunpack.c.l.b16 %v175
    %v848 = vunpack.c.l.b16 %v176
    %v849 = vunpack.c.l.b16 %v177
    %v850 = vunpack.c.l.b16 %v178
    %v851 = vunpack.c.l.b16 %v179
    %v852 = vunpack.c.l.b16 %v180
    %v853 = vunpack.c.l.b16 %v181
    %v854 = vunpack.c.l.b16 %v182
    %v855 = vunpack.c.l.b16 %v183
    %v856 = vunpack.c.l.b16 %v184
    %v857 = vunpack.c.l.b16 %v185
    %v858 = vunpack.c.l.b16 %v186
    %v859 = vunpack.c.l.b16 %v187
    %v860 = vunpack.c.l.b16 %v188
    %v861 = vunpack.c.l.b16 %v189
    %v862 = vunpack.c.l.b16 %v190
    %v863 = vunpack.c.l.b16 %v191
    %v864 = vunpack.c.l.b16 %v192
    %v865 = vunpack.c.l.b16 %v193
    %v866 = vunpack.c.l.b16 %v194
    %v867 = vunpack.c.l.b16 %v195
    %v868 = vunpack.c.l.b16 %v196
    %v869 = vunpack.c.l.b16 %v197
    %v870 = vunpack.c.l.b16 %v198
    %v871 = vunpack.c.l.b16 %v199
    %v872 = vunpack.c.l.b16 %v200
    %v873 = vunpack.c.l.b16 %v201
    %v874 = vunpack.c.l.b16 %v202
    %v875 = vunpack.c.l.b16 %v203
    %v876 = vunpack.c.l.b16 %v204
    %v877 = vunpack.c.l.b16 %v205
    %v878 = vunpack.c.l.b16 %v206
    %v879 = vunpack.c.l.b16 %v207
    %v880 = vunpack.c.l.b16 %v208
    %v881 = vunpack.c.l.b16 %v209
    %v882 = vunpack.c.l.b16 %v210
    %v883 = vunpack.c.l.b16 %v211
    %v884 = vunpack.c.l.b16 %v212
    %v885 = vunpack.c.l.b16 %v213
    %v886 = vunpack.c.l.b16 %v214
    %v887 = vunpack.c.l.b16 %v215
    %v888 = vunpack.c.l.b16 %v216
    %v889 = vunpack.c.l.b16 %v217
    %v890 = vunpack.c.l.b16 %v218
    %v891 = vunpack.c.l.b16 %v219
    %v892 = vunpack.c.l.b16 %v220
    %v893 = vunpack.c.l.b16 %v221
    %v894 = vunpack.c.l.b16 %v222
    %v895 = vunpack.c.l.b16 %v223
    %v896 = vunpack.c.l.b16 %v224
    %v897 = vunpack.c.l.b16 %v225
    %v898 = vunpack.c.l.b16 %v226
    %v899 = vunpack.c.l.b16 %v227
    %v900 = vunpack.c.l.b16 %v228
    %v901 = vunpack.c.l.b16 %v229
    %v902 = vunpack.c.l.b16 %v230
    %v903 = vunpack.c.l.b16 %v231
    %v904 = vunpack.c.l.b16 %v232
    %v905 = vunpack.c.l.b16 %v233
    %v906 = vunpack.c.l.b16 %v234
    %v907 = vunpack.c.l.b16 %v235
    %v908 = vunpack.c.l.b16 %v236
    %v909 = vunpack.c.l.b16 %v237
    %v910 = vunpack.c.l.b16 %v238
    %v911 = vunpack.c.l.b16 %v239
    %v912 = vunpack.c.l.b16 %v240
    %v913 = vunpack.c.l.b16 %v241
    %v914 = vunpack.c.l.b16 %v242
    %v915 = vunpack.c.l.b16 %v243
    %v916 = vunpack.c.l.b16 %v244
    %v917 = vunpack.c.l.b16 %v245
    %v918 = vunpack.c.l.b16 %v246
    %v919 = vunpack.c.l.b16 %v247
    %v920 = vunpack.c.l.b16 %v248
    %v921 = vunpack.c.l.b16 %v249
    %v922 = vunpack.c.l.b16 %v250
    %v923 = vunpack.c.l.b16 %v251
    %v924 = vunpack.c.l.b16 %v252
    %v925 = vunpack.c.l.b16 %v253
    %v926 = vunpack.c.l.b16 %v254
    %v927 = vunpack.c.l.b16 %v255
    %v928 = vunpack.c.l.b16 %v256
    %v929 = vunpack.c.l.b16 %v257
    %v930 = vunpack.c.l.b16 %v258
    %v931 = vunpack.c.l.b16 %v259
    %v932 = vunpack.c.l.b16 %v260
    %v933 = vunpack.c.l.b16 %v261
    %v934 = vunpack.c.l.b16 %v262
    %v935 = vunpack.c.l.b16 %v263
    %v936 = vunpack.c.l.b16 %v264
    %v937 = vunpack.c.l.b16 %v265
    %v938 = vunpack.c.l.b16 %v266
    %v939 = vunpack.c.l.b16 %v267
    %v940 = vunpack.c.l.b16 %v268
    %v941 = vunpack.c.l.b16 %v269
    %v942 = vunpack.c.l.b16 %v270
    %v943 = vunpack.c.l.b16 %v271
    %v944 = vunpack.c.l.b16 %v272
    %v945 = vunpack.c.l.b16 %v273
    %v946 = vunpack.c.l.b16 %v274
    %v947 = vunpack.c.l.b16 %v275
    %v948 = vunpack.c.l.b16 %v276
    %v949 = vunpack.c.l.b16 %v277
    %v950 = vunpack.c.l.b16 %v278
    %v951 = vunpack.c.l.b16 %v279
    %v952 = vunpack.c.l.b16 %v280
    %v953 = vunpack.c.l.b16 %v281
    %v954 = vunpack.c.l.b16 %v282
    %v955 = vunpack.c.l.b16 %v283
    %v956 = vunpack.c.l.b16 %v284
    %v957 = vunpack.c.l.b16 %v285
    %v958 = vunpack.c.l.b16 %v286
    %v959 = vunpack.c.l.b16 %v287
    %v960 = vunpack.c.l.b16 %v288
    %v961 = vunpack.c.l.b16 %v289
    %v962 = vunpack.c.l.b16 %v290
    %v963 = vunpack.c.l.b16 %v291
    %v964 = vunpack.c.l.b16 %v292
    %v965 = vunpack.c.l.b16 %v293
    %v966 = vunpack.c.l.b16 %v294
    %v967 = vunpack.c.l.b16 %v295
    %v968 = vunpack.c.l.b16 %v296
    %v969 = vunpack.c.l.b16 %v297
    %v970 = vunpack.c.l.b16 %v298
    %v971 = vunpack.c.l.b16 %v299
    %v972 = vunpack.c.l.b16 %v300
    %v973 = vunpack.c.l.b16 %v301
    %v974 = vunpack.c.l.b16 %v302
    %v975 = vunpack.c.l.b16 %v303
    %v976 = vunpack.c.l.b16 %v304
    %v977 = vunpack.c.l.b16 %v305
    %v978 = vunpack.c.l.b16 %v306
    %v979 = vunpack.c.l.b16 %v307
    %v980 = vunpack.c.l.b16 %v308
    %v981 = vunpack.c.l.b16 %v309
    %v982 = vunpack.c.l.b16 %v310
    %v983 = vunpack.c.l.b16 %v311
    %v984 = vunpack.c.l.b16 %v312
    %v985 = vunpack.c.l.b16 %v313
    %v986 = vunpack.c.l.b16 %v314
    %v987 = vunpack.c.l.b16 %v315
    %v988 = vunpack.c.l.b16 %v316
    %v989 = vunpack.c.l.b16 %v317
    %v990 = vunpack.c.l.b16 %v318
    %v991 = vunpack.c.l.b16 %v319
    %v992 = vunpack.c.l.b16 %v320
    %v993 = vunpack.c.l.b16 %v321
    %v994 = vunpack.c.l.b16 %v322
    %v995 = vunpack.c.l.b16 %v323
    %v996 = vunpack.c.l.b16 %v324
    %v997 = vunpack.c.l.b16 %v325
    %v998 = vunpack.c.l.b16 %v326
    %v999 = vunpack.c.l.b16 %v327
    %v1000 = vunpack.c.l.b16 %v328
    %v1001 = vunpack.c.l.b16 %v329
    %v1002 = vunpack.c.l.b16 %v330
    %v1003 = vunpack.c.l.b16 %v331
    %v1004 = vunpack.c.l.b16 %v332
    %v1005 = vunpack.c.l.b16 %v333
    %v1006 = vunpack.c.l.b16 %v334
    %v1007 = vunpack.c.l.b16 %v335
    %v1008 = vunpack.c.l.b16 %v336
    %v1009 = vunpack.c.l.b16 %v337
    %v1010 = vunpack.c.l.b16 %v338
    %v1011 = vunpack.c.l.b16 %v339
    %v1012 = vunpack.c.l.b16 %v340
    %v1013 = vunpack.c.l.b16 %v341
    %v1014 = vunpack.c.l.b16 %v342
    %v1015 = vunpack.c.l.b16 %v343
    %v1016 = vunpack.c.l.b16 %v344
    %v1017 = vunpack.c.l.b16 %v345
    %v1018 = vunpack.c.l.b16 %v346
    %v1019 = vunpack.c.l.b16 %v347
    %v1020 = vunpack.c.l.b16 %v348
    %v1021 = vunpack.c.l.b16 %v349
    %v1022 = vunpack.c.l.b16 %v350
    %v1023 = vunpack.c.l.b16 %v351
    %v1024 = vunpack.c.l.b16 %v352
    %v1025 = vunpack.c.l.b16 %v353
    %v1026 = vunpack.c.l.b16 %v354
    %v1027 = vunpack.c.l.b16 %v355
    %v1028 = vunpack.c.l.b16 %v356
    %v1029 = vunpack.c.l.b16 %v357
    %v1030 = vunpack.c.l.b16 %v358
    %v1031 = vunpack.c.l.b16 %v359
    %v1032 = vunpack.c.l.b16 %v360
    %v1033 = vunpack.c.l.b16 %v361
    %v1034 = vunpack.c.l.b16 %v362
    %v1035 = vunpack.c.l.b16 %v363
    %v1036 = vunpack.c.l.b16 %v364
    %v1037 = vunpack.c.l.b16 %v365
    %v1038 = vunpack.c.l.b16 %v366
    %v1039 = vunpack.c.l.b16 %v367
    %v1040 = vunpack.c.l.b16 %v368
    %v1041 = vunpack.c.l.b16 %v369
    %v1042 = vunpack.c.l.b16 %v370
    %v1043 = vunpack.c.l.b16 %v371
    %v1044 = vunpack.c.l.b16 %v372
    %v1045 = vunpack.c.l.b16 %v373
    %v1046 = vunpack.c.l.b16 %v374
    %v1047 = vunpack.c.l.b16 %v375
    %v1048 = vunpack.c.l.b16 %v376
    %v1049 = vunpack.c.l.b16 %v377
    %v1050 = vunpack.c.l.b16 %v378
    %v1051 = vunpack.c.l.b16 %v379
    %v1052 = vunpack.c.l.b16 %v380
    %v1053 = vunpack.c.l.b16 %v381
    %v1054 = vunpack.c.l.b16 %v382
    %v1055 = vunpack.c.l.b16 %v383
    %v1056 = vunpack.c.l.b16 %v384
    %v1057 = vunpack.c.l.b16 %v385
    %v1058 = vunpack.c.l.b16 %v386
    %v1059 = vunpack.c.l.b16 %v387
    %v1060 = vunpack.c.l.b16 %v388
    %v1061 = vunpack.c.l.b16 %v389
    %v1062 = vunpack.c.l.b16 %v390
    %v1063 = vunpack.c.l.b16 %v391
    %v1064 = vunpack.c.l.b16 %v392
    %v1065 = vunpack.c.l.b16 %v393
    %v1066 = vunpack.c.l.b16 %v394
    %v1067 = vunpack.c.l.b16 %v395
    %v1068 = vunpack.c.l.b16 %v396
    %v1069 = vunpack.c.l.b16 %v397
    %v1070 = vpack.c.b16 %v815, %v814
    %v1071 = vpack.c.b16 %v817, %v816
    %v1072 = vpack.c.b16 %v819, %v818
    %v1073 = vpack.c.b16 %v821, %v820
    %v1074 = vpack.c.b16 %v823, %v822
    %v1075 = vpack.c.b16 %v825, %v824
    %v1076 = vpack.c.b16 %v827, %v826
    %v1077 = vpack.c.b16 %v829, %v828
    %v1078 = vpack.c.b16 %v831, %v830
    %v1079 = vpack.c.b16 %v833, %v832
    %v1080 = vpack.c.b16 %v835, %v834
    %v1081 = vpack.c.b16 %v837, %v836
    %v1082 = vpack.c.b16 %v839, %v838
    %v1083 = vpack.c.b16 %v841, %v840
    %v1084 = vpack.c.b16 %v843, %v842
    %v1085 = vpack.c.b16 %v845, %v844
    %v1086 = vpack.c.b16 %v847, %v846
    %v1087 = vpack.c.b16 %v849, %v848
    %v1088 = vpack.c.b16 %v851, %v850
    %v1089 = vpack.c.b16 %v853, %v852
    %v1090 = vpack.c.b16 %v855, %v854
    %v1091 = vpack.c.b16 %v857, %v856
    %v1092 = vpack.c.b16 %v859, %v858
    %v1093 = vpack.c.b16 %v861, %v860
    %v1094 = vpack.c.b16 %v863, %v862
    %v1095 = vpack.c.b16 %v865, %v864
    %v1096 = vpack.c.b16 %v867, %v866
    %v1097 = vpack.c.b16 %v869, %v868
    %v1098 = vpack.c.b16 %v871, %v870
    %v1099 = vpack.c.b16 %v873, %v872
    %v1100 = vpack.c.b16 %v875, %v874
    %v1101 = vpack.c.b16 %v877, %v876
    %v1102 = vpack.c.b16 %v879, %v878
    %v1103 = vpack.c.b16 %v881, %v880
    %v1104 = vpack.c.b16 %v883, %v882
    %v1105 = vpack.c.b16 %v885, %v884
    %v1106 = vpack.c.b16 %v887, %v886
    %v1107 = vpack.c.b16 %v889, %v888
    %v1108 = vpack.c.b16 %v891, %v890
    %v1109 = vpack.c.b16 %v893, %v892
    %v1110 = vpack.c.b16 %v895, %v894
    %v1111 = vpack.c.b16 %v897, %v896
    %v1112 = vpack.c.b16 %v899, %v898
    %v1113 = vpack.c.b16 %v901, %v900
    %v1114 = vpack.c.b16 %v903, %v902
    %v1115 = vpack.c.b16 %v905, %v904
    %v1116 = vpack.c.b16 %v907, %v906
    %v1117 = vpack.c.b16 %v909, %v908
    %v1118 = vpack.c.b16 %v911, %v910
    %v1119 = vpack.c.b16 %v913, %v912
    %v1120 = vpack.c.b16 %v915, %v914
    %v1121 = vpack.c.b16 %v917, %v916
    %v1122 = vpack.c.b16 %v919, %v918
    %v1123 = vpack.c.b16 %v921, %v920
    %v1124 = vpack.c.b16 %v923, %v922
    %v1125 = vpack.c.b16 %v925, %v924
    %v1126 = vpack.c.b16 %v927, %v926
    %v1127 = vpack.c.b16 %v929, %v928
    %v1128 = vpack.c.b16 %v931, %v930
    %v1129 = vpack.c.b16 %v933, %v932
    %v1130 = vpack.c.b16 %v935, %v934
    %v1131 = vpack.c.b16 %v937, %v936
    %v1132 = vpack.c.b16 %v939, %v938
    %v1133 = vpack.c.b16 %v941, %v940
    %v1134 = vpack.c.b16 %v943, %v942
    %v1135 = vpack.c.b16 %v945, %v944
    %v1136 = vpack.c.b16 %v947, %v946
    %v1137 = vpack.c.b16 %v949, %v948
    %v1138 = vpack.c.b16 %v951, %v950
    %v1139 = vpack.c.b16 %v953, %v952
    %v1140 = vpack.c.b16 %v955, %v954
    %v1141 = vpack.c.b16 %v957, %v956
    %v1142 = vpack.c.b16 %v959, %v958
    %v1143 = vpack.c.b16 %v961, %v960
    %v1144 = vpack.c.b16 %v963, %v962
    %v1145 = vpack.c.b16 %v965, %v964
    %v1146 = vpack.c.b16 %v967, %v966
    %v1147 = vpack.c.b16 %v969, %v968
    %v1148 = vpack.c.b16 %v971, %v970
    %v1149 = vpack.c.b16 %v973, %v972
    %v1150 = vpack.c.b16 %v975, %v974
    %v1151 = vpack.c.b16 %v977, %v976
    %v1152 = vpack.c.b16 %v979, %v978
    %v1153 = vpack.c.b16 %v981, %v980
    %v1154 = vpack.c.b16 %v983, %v982
    %v1155 = vpack.c.b16 %v985, %v984
    %v1156 = vpack.c.b16 %v987, %v986
    %v1157 = vpack.c.b16 %v989, %v988
    %v1158 = vpack.c.b16 %v991, %v990
    %v1159 = vpack.c.b16 %v993, %v992
    %v1160 = vpack.c.b16 %v995, %v994
    %v1161 = vpack.c.b16 %v997, %v996
    %v1162 = vpack.c.b16 %v999, %v998
    %v1163 = vpack.c.b16 %v1001, %v1000
    %v1164 = vpack.c.b16 %v1003, %v1002
    %v1165 = vpack.c.b16 %v1005, %v1004
    %v1166 = vpack.c.b16 %v1007, %v1006
    %v1167 = vpack.c.b16 %v1009, %v1008
    %v1168 = vpack.c.b16 %v1011, %v1010
    %v1169 = vpack.c.b16 %v1013, %v1012
    %v1170 = vpack.c.b16 %v1015, %v1014
    %v1171 = vpack.c.b16 %v1017, %v1016
    %v1172 = vpack.c.b16 %v1019, %v1018
    %v1173 = vpack.c.b16 %v1021, %v1020
    %v1174 = vpack.c.b16 %v1023, %v1022
    %v1175 = vpack.c.b16 %v1025, %v1024
    %v1176 = vpack.c.b16 %v1027, %v1026
    %v1177 = vpack.c.b16 %v1029, %v1028
    %v1178 = vpack.c.b16 %v1031, %v1030
    %v1179 = vpack.c.b16 %v1033, %v1032
    %v1180 = vpack.c.b16 %v1035, %v1034
    %v1181 = vpack.c.b16 %v1037, %v1036
    %v1182 = vpack.c.b16 %v1039, %v1038
    %v1183 = vpack.c.b16 %v1041, %v1040
    %v1184 = vpack.c.b16 %v1043, %v1042
    %v1185 = vpack.c.b16 %v1045, %v1044
    %v1186 = vpack.c.b16 %v1047, %v1046
    %v1187 = vpack.c.b16 %v1049, %v1048
    %v1188 = vpack.c.b16 %v1051, %v1050
    %v1189 = vpack.c.b16 %v1053, %v1052
    %v1190 = vpack.c.b16 %v1055, %v1054
    %v1191 = vpack.c.b16 %v1057, %v1056
    %v1192 = vpack.c.b16 %v1059, %v1058
    %v1193 = vpack.c.b16 %v1061, %v1060
    %v1194 = vpack.c.b16 %v1063, %v1062
    %v1195 = vpack.c.b16 %v1065, %v1064
    %v1196 = vpack.c.b16 %v1067, %v1066
    %v1197 = vpack.c.b16 %v1069, %v1068
    %1326 = vmatprep.subr.bf16.mxu0 0
    %1327 = vmatpush1.bf16.msra.mxu0 %v1070
    %1328 = vmatprep.subr.bf16.mxu0 0
    %1329 = vmatpush1.bf16.msra.mxu0 %v1071
    %1330 = vmatprep.subr.bf16.mxu0 0
    %1331 = vmatpush1.bf16.msra.mxu0 %v1072
    %1332 = vmatprep.subr.bf16.mxu0 0
    %1333 = vmatpush1.bf16.msra.mxu0 %v1073
    %1334 = vmatprep.subr.bf16.mxu0 0
    %1335 = vmatpush1.bf16.msra.mxu0 %v1074
    %1336 = vmatprep.subr.bf16.mxu0 0
    %1337 = vmatpush1.bf16.msra.mxu0 %v1075
    %1338 = vmatprep.subr.bf16.mxu0 0
    %1339 = vmatpush1.bf16.msra.mxu0 %v1076
    %1340 = vmatprep.subr.bf16.mxu0 0
    %1341 = vmatpush1.bf16.msra.mxu0 %v1077
    %1342 = vmatprep.subr.bf16.mxu0 0
    %1343 = vmatpush1.bf16.msra.mxu0 %v1078
    %1344 = vmatprep.subr.bf16.mxu0 0
    %1345 = vmatpush1.bf16.msra.mxu0 %v1079
    %1346 = vmatprep.subr.bf16.mxu0 0
    %1347 = vmatpush1.bf16.msra.mxu0 %v1080
    %1348 = vmatprep.subr.bf16.mxu0 0
    %1349 = vmatpush1.bf16.msra.mxu0 %v1081
    %1350 = vmatprep.subr.bf16.mxu0 0
    %1351 = vmatpush1.bf16.msra.mxu0 %v1082
    %1352 = vmatprep.subr.bf16.mxu0 0
    %1353 = vmatpush1.bf16.msra.mxu0 %v1083
    %1354 = vmatprep.subr.bf16.mxu0 0
    %1355 = vmatpush1.bf16.msra.mxu0 %v1084
    %1356 = vmatprep.subr.bf16.mxu0 0
    %1357 = vmatpush1.bf16.msra.mxu0 %v1085
    %1358 = vmatprep.mubr.bf16.mxu0 %v495
    %1359 = vmatmul.mubr.bf16.gmra.mrb[0].mxu0 %v494
    %v1360 = vpop.f32.mrb[0].mxu0
    %v1361 = vadd.f32 0.0, %v1360
    %v1362 = vpop.f32.mrb[0].mxu0
    %v1363 = vpop.f32.mrb[0].mxu0
    %v1364 = vadd.f32 0.0, %v1363
    %v1365 = vpop.f32.mrb[0].mxu0
    %1366 = vmatprep.mubr.bf16.mxu0 %v511
    %1367 = vmatmul.mubr.bf16.gmra.mrb[0].mxu0 %v510
    %v1368 = vpop.f32.mrb[0].mxu0
    %v1369 = vadd.f32 0.0, %v1368
    %v1370 = vpop.f32.mrb[0].mxu0
    %v1371 = vpop.f32.mrb[0].mxu0
    %v1372 = vadd.f32 0.0, %v1371
    %v1373 = vpop.f32.mrb[0].mxu0
    %1374 = vdwg.mxu0
    %1375 = vmatprep.subr.bf16.mxu0 0
    %1376 = vmatpush1.bf16.msra.mxu0 %v1086
    %1377 = vmatprep.subr.bf16.mxu0 0
    %1378 = vmatpush1.bf16.msra.mxu0 %v1087
    %1379 = vmatprep.subr.bf16.mxu0 0
    %1380 = vmatpush1.bf16.msra.mxu0 %v1088
    %1381 = vmatprep.subr.bf16.mxu0 0
    %1382 = vmatpush1.bf16.msra.mxu0 %v1089
    %1383 = vmatprep.subr.bf16.mxu0 0
    %1384 = vmatpush1.bf16.msra.mxu0 %v1090
    %1385 = vmatprep.subr.bf16.mxu0 0
    %1386 = vmatpush1.bf16.msra.mxu0 %v1091
    %1387 = vmatprep.subr.bf16.mxu0 0
    %1388 = vmatpush1.bf16.msra.mxu0 %v1092
    %1389 = vmatprep.subr.bf16.mxu0 0
    %1390 = vmatpush1.bf16.msra.mxu0 %v1093
    %1391 = vmatprep.subr.bf16.mxu0 0
    %1392 = vmatpush1.bf16.msra.mxu0 %v1094
    %1393 = vmatprep.subr.bf16.mxu0 0
    %1394 = vmatpush1.bf16.msra.mxu0 %v1095
    %1395 = vmatprep.subr.bf16.mxu0 0
    %1396 = vmatpush1.bf16.msra.mxu0 %v1096
    %1397 = vmatprep.subr.bf16.mxu0 0
    %1398 = vmatpush1.bf16.msra.mxu0 %v1097
    %1399 = vmatprep.subr.bf16.mxu0 0
    %1400 = vmatpush1.bf16.msra.mxu0 %v1098
    %1401 = vmatprep.subr.bf16.mxu0 0
    %1402 = vmatpush1.bf16.msra.mxu0 %v1099
    %1403 = vmatprep.subr.bf16.mxu0 0
    %1404 = vmatpush1.bf16.msra.mxu0 %v1100
    %1405 = vmatprep.subr.bf16.mxu0 0
    %1406 = vmatpush1.bf16.msra.mxu0 %v1101
    %1407 = vmatprep.mubr.bf16.mxu0 %v497
    %1408 = vmatmul.mubr.bf16.gmra.mrb[0].mxu0 %v496
    %v1409 = vpop.f32.mrb[0].mxu0
    %v1410 = vadd.f32 %v1361, %v1409
    %v1411 = vpop.f32.mrb[0].mxu0
    %v1412 = vpop.f32.mrb[0].mxu0
    %v1413 = vadd.f32 %v1364, %v1412
    %v1414 = vpop.f32.mrb[0].mxu0
    %1415 = vmatprep.mubr.bf16.mxu0 %v513
    %1416 = vmatmul.mubr.bf16.gmra.mrb[0].mxu0 %v512
    %v1417 = vpop.f32.mrb[0].mxu0
    %v1418 = vadd.f32 %v1369, %v1417
    %v1419 = vpop.f32.mrb[0].mxu0
    %v1420 = vpop.f32.mrb[0].mxu0
    %v1421 = vadd.f32 %v1372, %v1420
    %v1422 = vpop.f32.mrb[0].mxu0
    %1423 = vdwg.mxu0
    %1424 = vmatprep.subr.bf16.mxu0 0
    %1425 = vmatpush1.bf16.msra.mxu0 %v1102
    %1426 = vmatprep.subr.bf16.mxu0 0
    %1427 = vmatpush1.bf16.msra.mxu0 %v1103
    %1428 = vmatprep.subr.bf16.mxu0 0
    %1429 = vmatpush1.bf16.msra.mxu0 %v1104
    %1430 = vmatprep.subr.bf16.mxu0 0
    %1431 = vmatpush1.bf16.msra.mxu0 %v1105
    %1432 = vmatprep.subr.bf16.mxu0 0
    %1433 = vmatpush1.bf16.msra.mxu0 %v1106
    %1434 = vmatprep.subr.bf16.mxu0 0
    %1435 = vmatpush1.bf16.msra.mxu0 %v1107
    %1436 = vmatprep.subr.bf16.mxu0 0
    %1437 = vmatpush1.bf16.msra.mxu0 %v1108
    %1438 = vmatprep.subr.bf16.mxu0 0
    %1439 = vmatpush1.bf16.msra.mxu0 %v1109
    %1440 = vmatprep.subr.bf16.mxu0 0
    %1441 = vmatpush1.bf16.msra.mxu0 %v1110
    %1442 = vmatprep.subr.bf16.mxu0 0
    %1443 = vmatpush1.bf16.msra.mxu0 %v1111
    %1444 = vmatprep.subr.bf16.mxu0 0
    %1445 = vmatpush1.bf16.msra.mxu0 %v1112
    %1446 = vmatprep.subr.bf16.mxu0 0
    %1447 = vmatpush1.bf16.msra.mxu0 %v1113
    %1448 = vmatprep.subr.bf16.mxu0 0
    %1449 = vmatpush1.bf16.msra.mxu0 %v1114
    %1450 = vmatprep.subr.bf16.mxu0 0
    %1451 = vmatpush1.bf16.msra.mxu0 %v1115
    %1452 = vmatprep.subr.bf16.mxu0 0
    %1453 = vmatpush1.bf16.msra.mxu0 %v1116
    %1454 = vmatprep.subr.bf16.mxu0 0
    %1455 = vmatpush1.bf16.msra.mxu0 %v1117
    %1456 = vmatprep.mubr.bf16.mxu0 %v499
    %1457 = vmatmul.mubr.bf16.gmra.mrb[0].mxu0 %v498
    %v1458 = vpop.f32.mrb[0].mxu0
    %v1459 = vadd.f32 %v1410, %v1458
    %v1460 = vpop.f32.mrb[0].mxu0
    %v1461 = vpop.f32.mrb[0].mxu0
    %v1462 = vadd.f32 %v1413, %v1461
    %v1463 = vpop.f32.mrb[0].mxu0
    %1464 = vmatprep.mubr.bf16.mxu0 %v515
    %1465 = vmatmul.mubr.bf16.gmra.mrb[0].mxu0 %v514
    %v1466 = vpop.f32.mrb[0].mxu0
    %v1467 = vadd.f32 %v1418, %v1466
    %v1468 = vpop.f32.mrb[0].mxu0
    %v1469 = vpop.f32.mrb[0].mxu0
    %v1470 = vadd.f32 %v1421, %v1469
    %v1471 = vpop.f32.mrb[0].mxu0
    %1472 = vdwg.mxu0
    %1473 = vmatprep.subr.bf16.mxu0 0
    %1474 = vmatpush1.bf16.msra.mxu0 %v1118
    %1475 = vmatprep.subr.bf16.mxu0 0
    %1476 = vmatpush1.bf16.msra.mxu0 %v1119
    %1477 = vmatprep.subr.bf16.mxu0 0
    %1478 = vmatpush1.bf16.msra.mxu0 %v1120
    %1479 = vmatprep.subr.bf16.mxu0 0
    %1480 = vmatpush1.bf16.msra.mxu0 %v1121
    %1481 = vmatprep.subr.bf16.mxu0 0
    %1482 = vmatpush1.bf16.msra.mxu0 %v1122
    %1483 = vmatprep.subr.bf16.mxu0 0
    %1484 = vmatpush1.bf16.msra.mxu0 %v1123
    %1485 = vmatprep.subr.bf16.mxu0 0
    %1486 = vmatpush1.bf16.msra.mxu0 %v1124
    %1487 = vmatprep.subr.bf16.mxu0 0
    %1488 = vmatpush1.bf16.msra.mxu0 %v1125
    %1489 = vmatprep.subr.bf16.mxu0 0
    %1490 = vmatpush1.bf16.msra.mxu0 %v1126
    %1491 = vmatprep.subr.bf16.mxu0 0
    %1492 = vmatpush1.bf16.msra.mxu0 %v1127
    %1493 = vmatprep.subr.bf16.mxu0 0
    %1494 = vmatpush1.bf16.msra.mxu0 %v1128
    %1495 = vmatprep.subr.bf16.mxu0 0
    %1496 = vmatpush1.bf16.msra.mxu0 %v1129
    %1497 = vmatprep.subr.bf16.mxu0 0
    %1498 = vmatpush1.bf16.msra.mxu0 %v1130
    %1499 = vmatprep.subr.bf16.mxu0 0
    %1500 = vmatpush1.bf16.msra.mxu0 %v1131
    %1501 = vmatprep.subr.bf16.mxu0 0
    %1502 = vmatpush1.bf16.msra.mxu0 %v1132
    %1503 = vmatprep.subr.bf16.mxu0 0
    %1504 = vmatpush1.bf16.msra.mxu0 %v1133
    %1505 = vmatprep.mubr.bf16.mxu0 %v501
    %1506 = vmatmul.mubr.bf16.gmra.mrb[0].mxu0 %v500
    %v1507 = vpop.f32.mrb[0].mxu0
    %v1508 = vadd.f32 %v1459, %v1507
    %v1509 = vpop.f32.mrb[0].mxu0
    %v1510 = vpop.f32.mrb[0].mxu0
    %v1511 = vadd.f32 %v1462, %v1510
    %v1512 = vpop.f32.mrb[0].mxu0
    %1513 = vmatprep.mubr.bf16.mxu0 %v517
    %1514 = vmatmul.mubr.bf16.gmra.mrb[0].mxu0 %v516
    %v1515 = vpop.f32.mrb[0].mxu0
    %v1516 = vadd.f32 %v1467, %v1515
    %v1517 = vpop.f32.mrb[0].mxu0
    %v1518 = vpop.f32.mrb[0].mxu0
    %v1519 = vadd.f32 %v1470, %v1518
    %v1520 = vpop.f32.mrb[0].mxu0
    %1521 = vdwg.mxu0
    %1522 = vmatprep.subr.bf16.mxu0 0
    %1523 = vmatpush1.bf16.msra.mxu0 %v1134
    %1524 = vmatprep.subr.bf16.mxu0 0
    %1525 = vmatpush1.bf16.msra.mxu0 %v1135
    %1526 = vmatprep.subr.bf16.mxu0 0
    %1527 = vmatpush1.bf16.msra.mxu0 %v1136
    %1528 = vmatprep.subr.bf16.mxu0 0
    %1529 = vmatpush1.bf16.msra.mxu0 %v1137
    %1530 = vmatprep.subr.bf16.mxu0 0
    %1531 = vmatpush1.bf16.msra.mxu0 %v1138
    %1532 = vmatprep.subr.bf16.mxu0 0
    %1533 = vmatpush1.bf16.msra.mxu0 %v1139
    %1534 = vmatprep.subr.bf16.mxu0 0
    %1535 = vmatpush1.bf16.msra.mxu0 %v1140
    %1536 = vmatprep.subr.bf16.mxu0 0
    %1537 = vmatpush1.bf16.msra.mxu0 %v1141
    %1538 = vmatprep.subr.bf16.mxu0 0
    %1539 = vmatpush1.bf16.msra.mxu0 %v1142
    %1540 = vmatprep.subr.bf16.mxu0 0
    %1541 = vmatpush1.bf16.msra.mxu0 %v1143
    %1542 = vmatprep.subr.bf16.mxu0 0
    %1543 = vmatpush1.bf16.msra.mxu0 %v1144
    %1544 = vmatprep.subr.bf16.mxu0 0
    %1545 = vmatpush1.bf16.msra.mxu0 %v1145
    %1546 = vmatprep.subr.bf16.mxu0 0
    %1547 = vmatpush1.bf16.msra.mxu0 %v1146
    %1548 = vmatprep.subr.bf16.mxu0 0
    %1549 = vmatpush1.bf16.msra.mxu0 %v1147
    %1550 = vmatprep.subr.bf16.mxu0 0
    %1551 = vmatpush1.bf16.msra.mxu0 %v1148
    %1552 = vmatprep.subr.bf16.mxu0 0
    %1553 = vmatpush1.bf16.msra.mxu0 %v1149
    %1554 = vmatprep.mubr.bf16.mxu0 %v503
    %1555 = vmatmul.mubr.bf16.gmra.mrb[0].mxu0 %v502
    %v1556 = vpop.f32.mrb[0].mxu0
    %v1557 = vadd.f32 %v1508, %v1556
    %v1558 = vpop.f32.mrb[0].mxu0
    %v1559 = vpop.f32.mrb[0].mxu0
    %v1560 = vadd.f32 %v1511, %v1559
    %v1561 = vpop.f32.mrb[0].mxu0
    %1562 = vmatprep.mubr.bf16.mxu0 %v519
    %1563 = vmatmul.mubr.bf16.gmra.mrb[0].mxu0 %v518
    %v1564 = vpop.f32.mrb[0].mxu0
    %v1565 = vadd.f32 %v1516, %v1564
    %v1566 = vpop.f32.mrb[0].mxu0
    %v1567 = vpop.f32.mrb[0].mxu0
    %v1568 = vadd.f32 %v1519, %v1567
    %v1569 = vpop.f32.mrb[0].mxu0
    %1570 = vdwg.mxu0
    %1571 = vmatprep.subr.bf16.mxu0 0
    %1572 = vmatpush1.bf16.msra.mxu0 %v1150
    %1573 = vmatprep.subr.bf16.mxu0 0
    %1574 = vmatpush1.bf16.msra.mxu0 %v1151
    %1575 = vmatprep.subr.bf16.mxu0 0
    %1576 = vmatpush1.bf16.msra.mxu0 %v1152
    %1577 = vmatprep.subr.bf16.mxu0 0
    %1578 = vmatpush1.bf16.msra.mxu0 %v1153
    %1579 = vmatprep.subr.bf16.mxu0 0
    %1580 = vmatpush1.bf16.msra.mxu0 %v1154
    %1581 = vmatprep.subr.bf16.mxu0 0
    %1582 = vmatpush1.bf16.msra.mxu0 %v1155
    %1583 = vmatprep.subr.bf16.mxu0 0
    %1584 = vmatpush1.bf16.msra.mxu0 %v1156
    %1585 = vmatprep.subr.bf16.mxu0 0
    %1586 = vmatpush1.bf16.msra.mxu0 %v1157
    %1587 = vmatprep.subr.bf16.mxu0 0
    %1588 = vmatpush1.bf16.msra.mxu0 %v1158
    %1589 = vmatprep.subr.bf16.mxu0 0
    %1590 = vmatpush1.bf16.msra.mxu0 %v1159
    %1591 = vmatprep.subr.bf16.mxu0 0
    %1592 = vmatpush1.bf16.msra.mxu0 %v1160
    %1593 = vmatprep.subr.bf16.mxu0 0
    %1594 = vmatpush1.bf16.msra.mxu0 %v1161
    %1595 = vmatprep.subr.bf16.mxu0 0
    %1596 = vmatpush1.bf16.msra.mxu0 %v1162
    %1597 = vmatprep.subr.bf16.mxu0 0
    %1598 = vmatpush1.bf16.msra.mxu0 %v1163
    %1599 = vmatprep.subr.bf16.mxu0 0
    %1600 = vmatpush1.bf16.msra.mxu0 %v1164
    %1601 = vmatprep.subr.bf16.mxu0 0
    %1602 = vmatpush1.bf16.msra.mxu0 %v1165
    %1603 = vmatprep.mubr.bf16.mxu0 %v505
    %1604 = vmatmul.mubr.bf16.gmra.mrb[0].mxu0 %v504
    %v1605 = vpop.f32.mrb[0].mxu0
    %v1606 = vadd.f32 %v1557, %v1605
    %v1607 = vpop.f32.mrb[0].mxu0
    %v1608 = vpop.f32.mrb[0].mxu0
    %v1609 = vadd.f32 %v1560, %v1608
    %v1610 = vpop.f32.mrb[0].mxu0
    %1611 = vmatprep.mubr.bf16.mxu0 %v521
    %1612 = vmatmul.mubr.bf16.gmra.mrb[0].mxu0 %v520
    %v1613 = vpop.f32.mrb[0].mxu0
    %v1614 = vadd.f32 %v1565, %v1613
    %v1615 = vpop.f32.mrb[0].mxu0
    %v1616 = vpop.f32.mrb[0].mxu0
    %v1617 = vadd.f32 %v1568, %v1616
    %v1618 = vpop.f32.mrb[0].mxu0
    %1619 = vdwg.mxu0
    %1620 = vmatprep.subr.bf16.mxu0 0
    %1621 = vmatpush1.bf16.msra.mxu0 %v1166
    %1622 = vmatprep.subr.bf16.mxu0 0
    %1623 = vmatpush1.bf16.msra.mxu0 %v1167
    %1624 = vmatprep.subr.bf16.mxu0 0
    %1625 = vmatpush1.bf16.msra.mxu0 %v1168
    %1626 = vmatprep.subr.bf16.mxu0 0
    %1627 = vmatpush1.bf16.msra.mxu0 %v1169
    %1628 = vmatprep.subr.bf16.mxu0 0
    %1629 = vmatpush1.bf16.msra.mxu0 %v1170
    %1630 = vmatprep.subr.bf16.mxu0 0
    %1631 = vmatpush1.bf16.msra.mxu0 %v1171
    %1632 = vmatprep.subr.bf16.mxu0 0
    %1633 = vmatpush1.bf16.msra.mxu0 %v1172
    %1634 = vmatprep.subr.bf16.mxu0 0
    %1635 = vmatpush1.bf16.msra.mxu0 %v1173
    %1636 = vmatprep.subr.bf16.mxu0 0
    %1637 = vmatpush1.bf16.msra.mxu0 %v1174
    %1638 = vmatprep.subr.bf16.mxu0 0
    %1639 = vmatpush1.bf16.msra.mxu0 %v1175
    %1640 = vmatprep.subr.bf16.mxu0 0
    %1641 = vmatpush1.bf16.msra.mxu0 %v1176
    %1642 = vmatprep.subr.bf16.mxu0 0
    %1643 = vmatpush1.bf16.msra.mxu0 %v1177
    %1644 = vmatprep.subr.bf16.mxu0 0
    %1645 = vmatpush1.bf16.msra.mxu0 %v1178
    %1646 = vmatprep.subr.bf16.mxu0 0
    %1647 = vmatpush1.bf16.msra.mxu0 %v1179
    %1648 = vmatprep.subr.bf16.mxu0 0
    %1649 = vmatpush1.bf16.msra.mxu0 %v1180
    %1650 = vmatprep.subr.bf16.mxu0 0
    %1651 = vmatpush1.bf16.msra.mxu0 %v1181
    %1652 = vmatprep.mubr.bf16.mxu0 %v507
    %1653 = vmatmul.mubr.bf16.gmra.mrb[0].mxu0 %v506
    %v1654 = vpop.f32.mrb[0].mxu0
    %v1655 = vadd.f32 %v1606, %v1654
    %v1656 = vpop.f32.mrb[0].mxu0
    %v1657 = vpop.f32.mrb[0].mxu0
    %v1658 = vadd.f32 %v1609, %v1657
    %v1659 = vpop.f32.mrb[0].mxu0
    %1660 = vmatprep.mubr.bf16.mxu0 %v523
    %1661 = vmatmul.mubr.bf16.gmra.mrb[0].mxu0 %v522
    %v1662 = vpop.f32.mrb[0].mxu0
    %v1663 = vadd.f32 %v1614, %v1662
    %v1664 = vpop.f32.mrb[0].mxu0
    %v1665 = vpop.f32.mrb[0].mxu0
    %v1666 = vadd.f32 %v1617, %v1665
    %v1667 = vpop.f32.mrb[0].mxu0
    %1668 = vdwg.mxu0
    %1669 = vmatprep.subr.bf16.mxu0 0
    %1670 = vmatpush1.bf16.msra.mxu0 %v1182
    %1671 = vmatprep.subr.bf16.mxu0 0
    %1672 = vmatpush1.bf16.msra.mxu0 %v1183
    %1673 = vmatprep.subr.bf16.mxu0 0
    %1674 = vmatpush1.bf16.msra.mxu0 %v1184
    %1675 = vmatprep.subr.bf16.mxu0 0
    %1676 = vmatpush1.bf16.msra.mxu0 %v1185
    %1677 = vmatprep.subr.bf16.mxu0 0
    %1678 = vmatpush1.bf16.msra.mxu0 %v1186
    %1679 = vmatprep.subr.bf16.mxu0 0
    %1680 = vmatpush1.bf16.msra.mxu0 %v1187
    %1681 = vmatprep.subr.bf16.mxu0 0
    %1682 = vmatpush1.bf16.msra.mxu0 %v1188
    %1683 = vmatprep.subr.bf16.mxu0 0
    %1684 = vmatpush1.bf16.msra.mxu0 %v1189
    %1685 = vmatprep.subr.bf16.mxu0 0
    %1686 = vmatpush1.bf16.msra.mxu0 %v1190
    %1687 = vmatprep.subr.bf16.mxu0 0
    %1688 = vmatpush1.bf16.msra.mxu0 %v1191
    %1689 = vmatprep.subr.bf16.mxu0 0
    %1690 = vmatpush1.bf16.msra.mxu0 %v1192
    %1691 = vmatprep.subr.bf16.mxu0 0
    %1692 = vmatpush1.bf16.msra.mxu0 %v1193
    %1693 = vmatprep.subr.bf16.mxu0 0
    %1694 = vmatpush1.bf16.msra.mxu0 %v1194
    %1695 = vmatprep.subr.bf16.mxu0 0
    %1696 = vmatpush1.bf16.msra.mxu0 %v1195
    %1697 = vmatprep.subr.bf16.mxu0 0
    %1698 = vmatpush1.bf16.msra.mxu0 %v1196
    %1699 = vmatprep.subr.bf16.mxu0 0
    %1700 = vmatpush1.bf16.msra.mxu0 %v1197
    %1701 = vmatprep.mubr.bf16.mxu0 %v509
    %1702 = vmatmul.mubr.bf16.gmra.mrb[0].mxu0 %v508
    %v1703 = vpop.f32.mrb[0].mxu0
    %v1704 = vadd.f32 %v1655, %v1703
    %v1705 = vpop.f32.mrb[0].mxu0
    %v1706 = vpop.f32.mrb[0].mxu0
    %v1707 = vadd.f32 %v1658, %v1706
    %v1708 = vpop.f32.mrb[0].mxu0
    %1709 = vmatprep.mubr.bf16.mxu0 %v525
    %1710 = vmatmul.mubr.bf16.gmra.mrb[0].mxu0 %v524
    %v1711 = vpop.f32.mrb[0].mxu0
    %v1712 = vadd.f32 %v1663, %v1711
    %v1713 = vpop.f32.mrb[0].mxu0
    %v1714 = vpop.f32.mrb[0].mxu0
    %v1715 = vadd.f32 %v1666, %v1714
    %v1716 = vpop.f32.mrb[0].mxu0
    %1717 = vdwg.mxu0
    %v1718 = vmax.f32 %v1704, 0.0
    %v1719 = vmax.f32 %v1707, 0.0
    %v1720 = vmax.f32 %v1712, 0.0
    %v1721 = vmax.f32 %v1715, 0.0
    %v1722 = vpack.c.bf16 %v1719, %v1718
    %v1723 = vpack.c.bf16 %v1721, %v1720
    %v1724 = vld [vmem:[#allocation7] sm:$0xf]
    %v1725 = vld [vmem:[#allocation7 + $0x4] sm:$0xf]
    %v1726 = vld [vmem:[#allocation7 + $0x8] sm:$0xf]
    %v1727 = vld [vmem:[#allocation7 + $0xc] sm:$0xf]
    %v1728 = vld [vmem:[#allocation7 + $0x10] sm:$0xf]
    %v1729 = vld [vmem:[#allocation7 + $0x14] sm:$0xf]
    %v1730 = vld [vmem:[#allocation7 + $0x18] sm:$0xf]
    %v1731 = vld [vmem:[#allocation7 + $0x1c] sm:$0xf]
    %v1732 = vld [vmem:[#allocation7 + $0x20] sm:$0xf]
    %v1733 = vld [vmem:[#allocation7 + $0x24] sm:$0xf]
    %v1734 = vld [vmem:[#allocation7 + $0x28] sm:$0xf]
    %v1735 = vld [vmem:[#allocation7 + $0x2c] sm:$0xf]
    %v1736 = vld [vmem:[#allocation7 + $0x30] sm:$0xf]
    %v1737 = vld [vmem:[#allocation7 + $0x34] sm:$0xf]
    %v1738 = vld [vmem:[#allocation7 + $0x38] sm:$0xf]
    %v1739 = vld [vmem:[#allocation7 + $0x3c] sm:$0xf]
    %v1756 = vunpack.c.l.b16 %v1724
    %v1757 = vunpack.c.l.b16 %v1725
    %v1758 = vunpack.c.l.b16 %v1726
    %v1759 = vunpack.c.l.b16 %v1727
    %v1760 = vunpack.c.l.b16 %v1728
    %v1761 = vunpack.c.l.b16 %v1729
    %v1762 = vunpack.c.l.b16 %v1730
    %v1763 = vunpack.c.l.b16 %v1731
    %v1764 = vunpack.c.l.b16 %v1732
    %v1765 = vunpack.c.l.b16 %v1733
    %v1766 = vunpack.c.l.b16 %v1734
    %v1767 = vunpack.c.l.b16 %v1735
    %v1768 = vunpack.c.l.b16 %v1736
    %v1769 = vunpack.c.l.b16 %v1737
    %v1770 = vunpack.c.l.b16 %v1738
    %v1771 = vunpack.c.l.b16 %v1739
    %v1772 = vpack.c.b16 %v1757, %v1756
    %v1773 = vpack.c.b16 %v1759, %v1758
    %v1774 = vpack.c.b16 %v1761, %v1760
    %v1775 = vpack.c.b16 %v1763, %v1762
    %v1776 = vpack.c.b16 %v1765, %v1764
    %v1777 = vpack.c.b16 %v1767, %v1766
    %v1778 = vpack.c.b16 %v1769, %v1768
    %v1779 = vpack.c.b16 %v1771, %v1770
    %1788 = vmatprep.subr.bf16.mxu0 0
    %1789 = vmatpush1.bf16.msra.mxu0 %v1772
    %1790 = vmatprep.subr.bf16.mxu0 0
    %1791 = vmatpush1.bf16.msra.mxu0 %v1773
    %1792 = vmatprep.subr.bf16.mxu0 0
    %1793 = vmatpush1.bf16.msra.mxu0 %v1774
    %1794 = vmatprep.subr.bf16.mxu0 0
    %1795 = vmatpush1.bf16.msra.mxu0 %v1775
    %1796 = vmatprep.subr.bf16.mxu0 0
    %1797 = vmatpush1.bf16.msra.mxu0 %v1776
    %1798 = vmatprep.subr.bf16.mxu0 0
    %1799 = vmatpush1.bf16.msra.mxu0 %v1777
    %1800 = vmatprep.subr.bf16.mxu0 0
    %1801 = vmatpush1.bf16.msra.mxu0 %v1778
    %1802 = vmatprep.subr.bf16.mxu0 0
    %1803 = vmatpush1.bf16.msra.mxu0 %v1779
    %1804 = vmatprep.subr.bf16.mxu0 0
    %1805 = vmatpush1.bf16.msra.mxu0 0
    %1806 = vmatprep.subr.bf16.mxu0 0
    %1807 = vmatpush1.bf16.msra.mxu0 0
    %1808 = vmatprep.subr.bf16.mxu0 0
    %1809 = vmatpush1.bf16.msra.mxu0 0
    %1810 = vmatprep.subr.bf16.mxu0 0
    %1811 = vmatpush1.bf16.msra.mxu0 0
    %1812 = vmatprep.subr.bf16.mxu0 0
    %1813 = vmatpush1.bf16.msra.mxu0 0
    %1814 = vmatprep.subr.bf16.mxu0 0
    %1815 = vmatpush1.bf16.msra.mxu0 0
    %1816 = vmatprep.subr.bf16.mxu0 0
    %1817 = vmatpush1.bf16.msra.mxu0 0
    %1818 = vmatprep.subr.bf16.mxu0 0
    %1819 = vmatpush1.bf16.msra.mxu0 0
    %1820 = vmatprep.mubr.bf16.mxu0 0
    %1821 = vmatmul.mubr.bf16.gmra.mrb[0].mxu0 %v1722
    %v1822 = vpop.f32.mrb[0].mxu0
    %v1823 = vadd.f32 0.0, %v1822
    %v1824 = vpop.f32.mrb[0].mxu0
    %v1825 = vpop.f32.mrb[0].mxu0
    %v1826 = vadd.f32 0.0, %v1825
    %v1827 = vpop.f32.mrb[0].mxu0
    %1828 = vmatprep.mubr.bf16.mxu0 0
    %1829 = vmatmul.mubr.bf16.gmra.mrb[0].mxu0 %v1723
    %v1830 = vpop.f32.mrb[0].mxu0
    %v1831 = vadd.f32 0.0, %v1830
    %v1832 = vpop.f32.mrb[0].mxu0
    %v1833 = vpop.f32.mrb[0].mxu0
    %v1834 = vadd.f32 0.0, %v1833
    %v1835 = vpop.f32.mrb[0].mxu0
    %1836 = vdwg.mxu0
    %v1837 = vmax.f32 %v1823, 0.0
    %v1838 = vmax.f32 %v1826, 0.0
    %v1839 = vmax.f32 %v1831, 0.0
    %v1840 = vmax.f32 %v1834, 0.0
    %v1841 = vpack.c.bf16 %v1838, %v1837
    %v1842 = vpack.c.bf16 %v1840, %v1839
    %v1843 = vld [vmem:[#allocation8] sm:$0xff]
    %v1844 = vld [vmem:[#allocation8 + $0x8] sm:$0xf]
    %v1845 = vld [vmem:[#allocation8 + $0xc] sm:$0xff]
    %v1846 = vld [vmem:[#allocation8 + $0x14] sm:$0xf]
    %v1847 = vld [vmem:[#allocation8 + $0x18] sm:$0xff]
    %v1848 = vld [vmem:[#allocation8 + $0x20] sm:$0xf]
    %v1849 = vld [vmem:[#allocation8 + $0x24] sm:$0xff]
    %v1850 = vld [vmem:[#allocation8 + $0x2c] sm:$0xf]
    %v1851 = vld [vmem:[#allocation8 + $0x30] sm:$0xff]
    %v1852 = vld [vmem:[#allocation8 + $0x38] sm:$0xf]
    %v1853 = vld [vmem:[#allocation8 + $0x3c] sm:$0xff]
    %v1854 = vld [vmem:[#allocation8 + $0x44] sm:$0xf]
    %v1855 = vld [vmem:[#allocation8 + $0x48] sm:$0xff]
    %v1856 = vld [vmem:[#allocation8 + $0x50] sm:$0xf]
    %v1857 = vld [vmem:[#allocation8 + $0x54] sm:$0xff]
    %v1858 = vld [vmem:[#allocation8 + $0x5c] sm:$0xf]
    %v1859 = vld [vmem:[#allocation8 + $0x60] sm:$0xff]
    %v1860 = vld [vmem:[#allocation8 + $0x68] sm:$0xf]
    %v1861 = vld [vmem:[#allocation8 + $0x6c] sm:$0xff]
    %v1862 = vld [vmem:[#allocation8 + $0x74] sm:$0xf]
    %v1863 = vld [vmem:[#allocation8 + $0x78] sm:$0xff]
    %v1864 = vld [vmem:[#allocation8 + $0x80] sm:$0xf]
    %v1865 = vld [vmem:[#allocation8 + $0x84] sm:$0xff]
    %v1866 = vld [vmem:[#allocation8 + $0x8c] sm:$0xf]
    %v1867 = vld [vmem:[#allocation8 + $0x90] sm:$0xff]
    %v1868 = vld [vmem:[#allocation8 + $0x98] sm:$0xf]
    %v1869 = vld [vmem:[#allocation8 + $0x9c] sm:$0xff]
    %v1870 = vld [vmem:[#allocation8 + $0xa4] sm:$0xf]
    %v1871 = vld [vmem:[#allocation8 + $0xa8] sm:$0xff]
    %v1872 = vld [vmem:[#allocation8 + $0xb0] sm:$0xf]
    %v1873 = vld [vmem:[#allocation8 + $0xb4] sm:$0xff]
    %v1874 = vld [vmem:[#allocation8 + $0xbc] sm:$0xf]
    %v1907 = vunpack.c.l.b16 %v1843
    %v1908 = vunpack.c.h.b16 %v1843
    %v1909 = vunpack.c.l.b16 %v1844
    %v1910 = vunpack.c.l.b16 %v1845
    %v1911 = vunpack.c.h.b16 %v1845
    %v1912 = vunpack.c.l.b16 %v1846
    %v1913 = vunpack.c.l.b16 %v1847
    %v1914 = vunpack.c.h.b16 %v1847
    %v1915 = vunpack.c.l.b16 %v1848
    %v1916 = vunpack.c.l.b16 %v1849
    %v1917 = vunpack.c.h.b16 %v1849
    %v1918 = vunpack.c.l.b16 %v1850
    %v1919 = vunpack.c.l.b16 %v1851
    %v1920 = vunpack.c.h.b16 %v1851
    %v1921 = vunpack.c.l.b16 %v1852
    %v1922 = vunpack.c.l.b16 %v1853
    %v1923 = vunpack.c.h.b16 %v1853
    %v1924 = vunpack.c.l.b16 %v1854
    %v1925 = vunpack.c.l.b16 %v1855
    %v1926 = vunpack.c.h.b16 %v1855
    %v1927 = vunpack.c.l.b16 %v1856
    %v1928 = vunpack.c.l.b16 %v1857
    %v1929 = vunpack.c.h.b16 %v1857
    %v1930 = vunpack.c.l.b16 %v1858
    %v1931 = vunpack.c.l.b16 %v1859
    %v1932 = vunpack.c.h.b16 %v1859
    %v1933 = vunpack.c.l.b16 %v1860
    %v1934 = vunpack.c.l.b16 %v1861
    %v1935 = vunpack.c.h.b16 %v1861
    %v1936 = vunpack.c.l.b16 %v1862
    %v1937 = vunpack.c.l.b16 %v1863
    %v1938 = vunpack.c.h.b16 %v1863
    %v1939 = vunpack.c.l.b16 %v1864
    %v1940 = vunpack.c.l.b16 %v1865
    %v1941 = vunpack.c.h.b16 %v1865
    %v1942 = vunpack.c.l.b16 %v1866
    %v1943 = vunpack.c.l.b16 %v1867
    %v1944 = vunpack.c.h.b16 %v1867
    %v1945 = vunpack.c.l.b16 %v1868
    %v1946 = vunpack.c.l.b16 %v1869
    %v1947 = vunpack.c.h.b16 %v1869
    %v1948 = vunpack.c.l.b16 %v1870
    %v1949 = vunpack.c.l.b16 %v1871
    %v1950 = vunpack.c.h.b16 %v1871
    %v1951 = vunpack.c.l.b16 %v1872
    %v1952 = vunpack.c.l.b16 %v1873
    %v1953 = vunpack.c.h.b16 %v1873
    %v1954 = vunpack.c.l.b16 %v1874
    %v1955 = vpack.c.b16 %v1910, %v1907
    %v1956 = vpack.c.b16 %v1911, %v1908
    %v1957 = vpack.c.b16 %v1912, %v1909
    %v1958 = vpack.c.b16 %v1916, %v1913
    %v1959 = vpack.c.b16 %v1917, %v1914
    %v1960 = vpack.c.b16 %v1918, %v1915
    %v1961 = vpack.c.b16 %v1922, %v1919
    %v1962 = vpack.c.b16 %v1923, %v1920
    %v1963 = vpack.c.b16 %v1924, %v1921
    %v1964 = vpack.c.b16 %v1928, %v1925
    %v1965 = vpack.c.b16 %v1929, %v1926
    %v1966 = vpack.c.b16 %v1930, %v1927
    %v1967 = vpack.c.b16 %v1934, %v1931
    %v1968 = vpack.c.b16 %v1935, %v1932
    %v1969 = vpack.c.b16 %v1936, %v1933
    %v1970 = vpack.c.b16 %v1940, %v1937
    %v1971 = vpack.c.b16 %v1941, %v1938
    %v1972 = vpack.c.b16 %v1942, %v1939
    %v1973 = vpack.c.b16 %v1946, %v1943
    %v1974 = vpack.c.b16 %v1947, %v1944
    %v1975 = vpack.c.b16 %v1948, %v1945
    %v1976 = vpack.c.b16 %v1952, %v1949
    %v1977 = vpack.c.b16 %v1953, %v1950
    %v1978 = vpack.c.b16 %v1954, %v1951
    %2003 = vmatprep.subr.bf16.mxu0 %v1956
    %2004 = vmatpush1.bf16.msra.mxu0 %v1955
    %2005 = vmatprep.subr.bf16.mxu0 %v1959
    %2006 = vmatpush1.bf16.msra.mxu0 %v1958
    %2007 = vmatprep.subr.bf16.mxu0 %v1962
    %2008 = vmatpush1.bf16.msra.mxu0 %v1961
    %2009 = vmatprep.subr.bf16.mxu0 %v1965
    %2010 = vmatpush1.bf16.msra.mxu0 %v1964
    %2011 = vmatprep.subr.bf16.mxu0 %v1968
    %2012 = vmatpush1.bf16.msra.mxu0 %v1967
    %2013 = vmatprep.subr.bf16.mxu0 %v1971
    %2014 = vmatpush1.bf16.msra.mxu0 %v1970
    %2015 = vmatprep.subr.bf16.mxu0 %v1974
    %2016 = vmatpush1.bf16.msra.mxu0 %v1973
    %2017 = vmatprep.subr.bf16.mxu0 %v1977
    %2018 = vmatpush1.bf16.msra.mxu0 %v1976
    %2019 = vmatprep.subr.bf16.mxu0 0
    %2020 = vmatpush1.bf16.msra.mxu0 0
    %2021 = vmatprep.subr.bf16.mxu0 0
    %2022 = vmatpush1.bf16.msra.mxu0 0
    %2023 = vmatprep.subr.bf16.mxu0 0
    %2024 = vmatpush1.bf16.msra.mxu0 0
    %2025 = vmatprep.subr.bf16.mxu0 0
    %2026 = vmatpush1.bf16.msra.mxu0 0
    %2027 = vmatprep.subr.bf16.mxu0 0
    %2028 = vmatpush1.bf16.msra.mxu0 0
    %2029 = vmatprep.subr.bf16.mxu0 0
    %2030 = vmatpush1.bf16.msra.mxu0 0
    %2031 = vmatprep.subr.bf16.mxu0 0
    %2032 = vmatpush1.bf16.msra.mxu0 0
    %2033 = vmatprep.subr.bf16.mxu0 0
    %2034 = vmatpush1.bf16.msra.mxu0 0
    %2035 = vmatprep.mubr.bf16.mxu0 0
    %2036 = vmatmul.mubr.bf16.gmra.mrb[0].mxu0 %v1841
    %v2037 = vpop.f32.mrb[0].mxu0
    %v2038 = vadd.f32 0.0, %v2037
    %v2039 = vpop.f32.mrb[0].mxu0
    %v2040 = vadd.f32 0.0, %v2039
    %v2041 = vpop.f32.mrb[0].mxu0
    %v2042 = vadd.f32 0.0, %v2041
    %v2043 = vpop.f32.mrb[0].mxu0
    %v2044 = vadd.f32 0.0, %v2043
    %2045 = vmatprep.mubr.bf16.mxu0 0
    %2046 = vmatmul.mubr.bf16.gmra.mrb[0].mxu0 %v1842
    %v2047 = vpop.f32.mrb[0].mxu0
    %v2048 = vadd.f32 0.0, %v2047
    %v2049 = vpop.f32.mrb[0].mxu0
    %v2050 = vadd.f32 0.0, %v2049
    %v2051 = vpop.f32.mrb[0].mxu0
    %v2052 = vadd.f32 0.0, %v2051
    %v2053 = vpop.f32.mrb[0].mxu0
    %v2054 = vadd.f32 0.0, %v2053
    %2055 = vdwg.mxu0
    %2056 = vmatprep.subr.bf16.mxu0 0
    %2057 = vmatpush1.bf16.msra.mxu0 %v1957
    %2058 = vmatprep.subr.bf16.mxu0 0
    %2059 = vmatpush1.bf16.msra.mxu0 %v1960
    %2060 = vmatprep.subr.bf16.mxu0 0
    %2061 = vmatpush1.bf16.msra.mxu0 %v1963
    %2062 = vmatprep.subr.bf16.mxu0 0
    %2063 = vmatpush1.bf16.msra.mxu0 %v1966
    %2064 = vmatprep.subr.bf16.mxu0 0
    %2065 = vmatpush1.bf16.msra.mxu0 %v1969
    %2066 = vmatprep.subr.bf16.mxu0 0
    %2067 = vmatpush1.bf16.msra.mxu0 %v1972
    %2068 = vmatprep.subr.bf16.mxu0 0
    %2069 = vmatpush1.bf16.msra.mxu0 %v1975
    %2070 = vmatprep.subr.bf16.mxu0 0
    %2071 = vmatpush1.bf16.msra.mxu0 %v1978
    %2072 = vmatprep.subr.bf16.mxu0 0
    %2073 = vmatpush1.bf16.msra.mxu0 0
    %2074 = vmatprep.subr.bf16.mxu0 0
    %2075 = vmatpush1.bf16.msra.mxu0 0
    %2076 = vmatprep.subr.bf16.mxu0 0
    %2077 = vmatpush1.bf16.msra.mxu0 0
    %2078 = vmatprep.subr.bf16.mxu0 0
    %2079 = vmatpush1.bf16.msra.mxu0 0
    %2080 = vmatprep.subr.bf16.mxu0 0
    %2081 = vmatpush1.bf16.msra.mxu0 0
    %2082 = vmatprep.subr.bf16.mxu0 0
    %2083 = vmatpush1.bf16.msra.mxu0 0
    %2084 = vmatprep.subr.bf16.mxu0 0
    %2085 = vmatpush1.bf16.msra.mxu0 0
    %2086 = vmatprep.subr.bf16.mxu0 0
    %2087 = vmatpush1.bf16.msra.mxu0 0
    %2088 = vmatprep.mubr.bf16.mxu0 0
    %2089 = vmatmul.mubr.bf16.gmra.mrb[0].mxu0 %v1841
    %v2090 = vpop.f32.mrb[0].mxu0
    %v2091 = vadd.f32 0.0, %v2090
    %v2092 = vpop.f32.mrb[0].mxu0
    %v2093 = vpop.f32.mrb[0].mxu0
    %v2094 = vadd.f32 0.0, %v2093
    %v2095 = vpop.f32.mrb[0].mxu0
    %2096 = vmatprep.mubr.bf16.mxu0 0
    %2097 = vmatmul.mubr.bf16.gmra.mrb[0].mxu0 %v1842
    %v2098 = vpop.f32.mrb[0].mxu0
    %v2099 = vadd.f32 0.0, %v2098
    %v2100 = vpop.f32.mrb[0].mxu0
    %v2101 = vpop.f32.mrb[0].mxu0
    %v2102 = vadd.f32 0.0, %v2101
    %v2103 = vpop.f32.mrb[0].mxu0
    %2104 = vdwg.mxu0
    %v2105 = vmax.f32 %v2038, 0.0
    %v2106 = vmax.f32 %v2040, 0.0
    %v2107 = vmax.f32 %v2091, 0.0
    %v2108 = vmax.f32 %v2042, 0.0
    %v2109 = vmax.f32 %v2044, 0.0
    %v2110 = vmax.f32 %v2094, 0.0
    %v2111 = vmax.f32 %v2048, 0.0
    %v2112 = vmax.f32 %v2050, 0.0
    %v2113 = vmax.f32 %v2099, 0.0
    %v2114 = vmax.f32 %v2052, 0.0
    %v2115 = vmax.f32 %v2054, 0.0
    %v2116 = vmax.f32 %v2102, 0.0
    %v2117 = vpack.c.bf16 %v2108, %v2105
    %v2118 = vpack.c.bf16 %v2109, %v2106
    %v2119 = vpack.c.bf16 %v2110, %v2107
    %v2120 = vpack.c.bf16 %v2114, %v2111
    %v2121 = vpack.c.bf16 %v2115, %v2112
    %v2122 = vpack.c.bf16 %v2116, %v2113
    %v2123 = vld [vmem:[#allocation10] sm:$0xf]
    %v2124 = vld [vmem:[#allocation10 + $0x4] sm:$0xf]
    %v2125 = vld [vmem:[#allocation10 + $0x8] sm:$0xf]
    %v2126 = vld [vmem:[#allocation10 + $0xc] sm:$0xf]
    %v2127 = vld [vmem:[#allocation10 + $0x10] sm:$0xf]
    %v2128 = vld [vmem:[#allocation10 + $0x14] sm:$0xf]
    %v2129 = vld [vmem:[#allocation10 + $0x18] sm:$0xf]
    %v2130 = vld [vmem:[#allocation10 + $0x1c] sm:$0xf]
    %v2131 = vld [vmem:[#allocation10 + $0x20] sm:$0xf]
    %v2132 = vld [vmem:[#allocation10 + $0x24] sm:$0xf]
    %v2133 = vld [vmem:[#allocation10 + $0x28] sm:$0xf]
    %v2134 = vld [vmem:[#allocation10 + $0x2c] sm:$0xf]
    %v2135 = vld [vmem:[#allocation10 + $0x30] sm:$0xf]
    %v2136 = vld [vmem:[#allocation10 + $0x34] sm:$0xf]
    %v2137 = vld [vmem:[#allocation10 + $0x38] sm:$0xf]
    %v2138 = vld [vmem:[#allocation10 + $0x3c] sm:$0xf]
    %v2155 = vunpack.c.l.b16 %v2123
    %v2156 = vunpack.c.l.b16 %v2124
    %v2157 = vunpack.c.l.b16 %v2125
    %v2158 = vunpack.c.l.b16 %v2126
    %v2159 = vunpack.c.l.b16 %v2127
    %v2160 = vunpack.c.l.b16 %v2128
    %v2161 = vunpack.c.l.b16 %v2129
    %v2162 = vunpack.c.l.b16 %v2130
    %v2163 = vunpack.c.l.b16 %v2131
    %v2164 = vunpack.c.l.b16 %v2132
    %v2165 = vunpack.c.l.b16 %v2133
    %v2166 = vunpack.c.l.b16 %v2134
    %v2167 = vunpack.c.l.b16 %v2135
    %v2168 = vunpack.c.l.b16 %v2136
    %v2169 = vunpack.c.l.b16 %v2137
    %v2170 = vunpack.c.l.b16 %v2138
    %v2171 = vpack.c.b16 %v2156, %v2155
    %v2172 = vpack.c.b16 %v2158, %v2157
    %v2173 = vpack.c.b16 %v2160, %v2159
    %v2174 = vpack.c.b16 %v2162, %v2161
    %v2175 = vpack.c.b16 %v2164, %v2163
    %v2176 = vpack.c.b16 %v2166, %v2165
    %v2177 = vpack.c.b16 %v2168, %v2167
    %v2178 = vpack.c.b16 %v2170, %v2169
    %2187 = vmatprep.subr.bf16.mxu0 0
    %2188 = vmatpush1.bf16.msra.mxu0 %v2171
    %2189 = vmatprep.subr.bf16.mxu0 0
    %2190 = vmatpush1.bf16.msra.mxu0 %v2172
    %2191 = vmatprep.subr.bf16.mxu0 0
    %2192 = vmatpush1.bf16.msra.mxu0 %v2173
    %2193 = vmatprep.subr.bf16.mxu0 0
    %2194 = vmatpush1.bf16.msra.mxu0 %v2174
    %2195 = vmatprep.subr.bf16.mxu0 0
    %2196 = vmatpush1.bf16.msra.mxu0 %v2175
    %2197 = vmatprep.subr.bf16.mxu0 0
    %2198 = vmatpush1.bf16.msra.mxu0 %v2176
    %2199 = vmatprep.subr.bf16.mxu0 0
    %2200 = vmatpush1.bf16.msra.mxu0 %v2177
    %2201 = vmatprep.subr.bf16.mxu0 0
    %2202 = vmatpush1.bf16.msra.mxu0 %v2178
    %2203 = vmatprep.subr.bf16.mxu0 0
    %2204 = vmatpush1.bf16.msra.mxu0 0
    %2205 = vmatprep.subr.bf16.mxu0 0
    %2206 = vmatpush1.bf16.msra.mxu0 0
    %2207 = vmatprep.subr.bf16.mxu0 0
    %2208 = vmatpush1.bf16.msra.mxu0 0
    %2209 = vmatprep.subr.bf16.mxu0 0
    %2210 = vmatpush1.bf16.msra.mxu0 0
    %2211 = vmatprep.subr.bf16.mxu0 0
    %2212 = vmatpush1.bf16.msra.mxu0 0
    %2213 = vmatprep.subr.bf16.mxu0 0
    %2214 = vmatpush1.bf16.msra.mxu0 0
    %2215 = vmatprep.subr.bf16.mxu0 0
    %2216 = vmatpush1.bf16.msra.mxu0 0
    %2217 = vmatprep.subr.bf16.mxu0 0
    %2218 = vmatpush1.bf16.msra.mxu0 0
    %2219 = vmatprep.mubr.bf16.mxu0 0
    %2220 = vmatmul.mubr.bf16.gmra.mrb[0].mxu0 %v2117
    %v2221 = vpop.f32.mrb[0].mxu0
    %v2222 = vadd.f32 0.0, %v2221
    %v2223 = vpop.f32.mrb[0].mxu0
    %v2224 = vpop.f32.mrb[0].mxu0
    %v2225 = vadd.f32 0.0, %v2224
    %v2226 = vpop.f32.mrb[0].mxu0
    %2227 = vmatprep.mubr.bf16.mxu0 0
    %2228 = vmatmul.mubr.bf16.gmra.mrb[0].mxu0 %v2120
    %v2229 = vpop.f32.mrb[0].mxu0
    %v2230 = vadd.f32 0.0, %v2229
    %v2231 = vpop.f32.mrb[0].mxu0
    %v2232 = vpop.f32.mrb[0].mxu0
    %v2233 = vadd.f32 0.0, %v2232
    %v2234 = vpop.f32.mrb[0].mxu0
    %2235 = vdwg.mxu0
    %s2236 = scalar_lea.vmem [#allocation10], 64
    %v2237 = vld [vmem:[%s2236] sm:$0xf]
    %v2238 = vld [vmem:[%s2236 + $0x4] sm:$0xf]
    %v2239 = vld [vmem:[%s2236 + $0x8] sm:$0xf]
    %v2240 = vld [vmem:[%s2236 + $0xc] sm:$0xf]
    %v2241 = vld [vmem:[%s2236 + $0x10] sm:$0xf]
    %v2242 = vld [vmem:[%s2236 + $0x14] sm:$0xf]
    %v2243 = vld [vmem:[%s2236 + $0x18] sm:$0xf]
    %v2244 = vld [vmem:[%s2236 + $0x1c] sm:$0xf]
    %v2245 = vld [vmem:[%s2236 + $0x20] sm:$0xf]
    %v2246 = vld [vmem:[%s2236 + $0x24] sm:$0xf]
    %v2247 = vld [vmem:[%s2236 + $0x28] sm:$0xf]
    %v2248 = vld [vmem:[%s2236 + $0x2c] sm:$0xf]
    %v2249 = vld [vmem:[%s2236 + $0x30] sm:$0xf]
    %v2250 = vld [vmem:[%s2236 + $0x34] sm:$0xf]
    %v2251 = vld [vmem:[%s2236 + $0x38] sm:$0xf]
    %v2252 = vld [vmem:[%s2236 + $0x3c] sm:$0xf]
    %v2269 = vunpack.c.l.b16 %v2237
    %v2270 = vunpack.c.l.b16 %v2238
    %v2271 = vunpack.c.l.b16 %v2239
    %v2272 = vunpack.c.l.b16 %v2240
    %v2273 = vunpack.c.l.b16 %v2241
    %v2274 = vunpack.c.l.b16 %v2242
    %v2275 = vunpack.c.l.b16 %v2243
    %v2276 = vunpack.c.l.b16 %v2244
    %v2277 = vunpack.c.l.b16 %v2245
    %v2278 = vunpack.c.l.b16 %v2246
    %v2279 = vunpack.c.l.b16 %v2247
    %v2280 = vunpack.c.l.b16 %v2248
    %v2281 = vunpack.c.l.b16 %v2249
    %v2282 = vunpack.c.l.b16 %v2250
    %v2283 = vunpack.c.l.b16 %v2251
    %v2284 = vunpack.c.l.b16 %v2252
    %v2285 = vpack.c.b16 %v2270, %v2269
    %v2286 = vpack.c.b16 %v2272, %v2271
    %v2287 = vpack.c.b16 %v2274, %v2273
    %v2288 = vpack.c.b16 %v2276, %v2275
    %v2289 = vpack.c.b16 %v2278, %v2277
    %v2290 = vpack.c.b16 %v2280, %v2279
    %v2291 = vpack.c.b16 %v2282, %v2281
    %v2292 = vpack.c.b16 %v2284, %v2283
    %2301 = vmatprep.subr.bf16.mxu0 0
    %2302 = vmatpush1.bf16.msra.mxu0 %v2285
    %2303 = vmatprep.subr.bf16.mxu0 0
    %2304 = vmatpush1.bf16.msra.mxu0 %v2286
    %2305 = vmatprep.subr.bf16.mxu0 0
    %2306 = vmatpush1.bf16.msra.mxu0 %v2287
    %2307 = vmatprep.subr.bf16.mxu0 0
    %2308 = vmatpush1.bf16.msra.mxu0 %v2288
    %2309 = vmatprep.subr.bf16.mxu0 0
    %2310 = vmatpush1.bf16.msra.mxu0 %v2289
    %2311 = vmatprep.subr.bf16.mxu0 0
    %2312 = vmatpush1.bf16.msra.mxu0 %v2290
    %2313 = vmatprep.subr.bf16.mxu0 0
    %2314 = vmatpush1.bf16.msra.mxu0 %v2291
    %2315 = vmatprep.subr.bf16.mxu0 0
    %2316 = vmatpush1.bf16.msra.mxu0 %v2292
    %2317 = vmatprep.subr.bf16.mxu0 0
    %2318 = vmatpush1.bf16.msra.mxu0 0
    %2319 = vmatprep.subr.bf16.mxu0 0
    %2320 = vmatpush1.bf16.msra.mxu0 0
    %2321 = vmatprep.subr.bf16.mxu0 0
    %2322 = vmatpush1.bf16.msra.mxu0 0
    %2323 = vmatprep.subr.bf16.mxu0 0
    %2324 = vmatpush1.bf16.msra.mxu0 0
    %2325 = vmatprep.subr.bf16.mxu0 0
    %2326 = vmatpush1.bf16.msra.mxu0 0
    %2327 = vmatprep.subr.bf16.mxu0 0
    %2328 = vmatpush1.bf16.msra.mxu0 0
    %2329 = vmatprep.subr.bf16.mxu0 0
    %2330 = vmatpush1.bf16.msra.mxu0 0
    %2331 = vmatprep.subr.bf16.mxu0 0
    %2332 = vmatpush1.bf16.msra.mxu0 0
    %2333 = vmatprep.mubr.bf16.mxu0 0
    %2334 = vmatmul.mubr.bf16.gmra.mrb[0].mxu0 %v2118
    %v2335 = vpop.f32.mrb[0].mxu0
    %v2336 = vadd.f32 0.0, %v2335
    %v2337 = vpop.f32.mrb[0].mxu0
    %v2338 = vpop.f32.mrb[0].mxu0
    %v2339 = vadd.f32 0.0, %v2338
    %v2340 = vpop.f32.mrb[0].mxu0
    %2341 = vmatprep.mubr.bf16.mxu0 0
    %2342 = vmatmul.mubr.bf16.gmra.mrb[0].mxu0 %v2121
    %v2343 = vpop.f32.mrb[0].mxu0
    %v2344 = vadd.f32 0.0, %v2343
    %v2345 = vpop.f32.mrb[0].mxu0
    %v2346 = vpop.f32.mrb[0].mxu0
    %v2347 = vadd.f32 0.0, %v2346
    %v2348 = vpop.f32.mrb[0].mxu0
    %2349 = vdwg.mxu0
    %s2350 = scalar_lea.vmem [#allocation10], 128
    %v2351 = vld [vmem:[%s2350] sm:$0xf]
    %v2352 = vld [vmem:[%s2350 + $0x4] sm:$0xf]
    %v2353 = vld [vmem:[%s2350 + $0x8] sm:$0xf]
    %v2354 = vld [vmem:[%s2350 + $0xc] sm:$0xf]
    %v2355 = vld [vmem:[%s2350 + $0x10] sm:$0xf]
    %v2356 = vld [vmem:[%s2350 + $0x14] sm:$0xf]
    %v2357 = vld [vmem:[%s2350 + $0x18] sm:$0xf]
    %v2358 = vld [vmem:[%s2350 + $0x1c] sm:$0xf]
    %v2359 = vld [vmem:[%s2350 + $0x20] sm:$0xf]
    %v2360 = vld [vmem:[%s2350 + $0x24] sm:$0xf]
    %v2361 = vld [vmem:[%s2350 + $0x28] sm:$0xf]
    %v2362 = vld [vmem:[%s2350 + $0x2c] sm:$0xf]
    %v2363 = vld [vmem:[%s2350 + $0x30] sm:$0xf]
    %v2364 = vld [vmem:[%s2350 + $0x34] sm:$0xf]
    %v2365 = vld [vmem:[%s2350 + $0x38] sm:$0xf]
    %v2366 = vld [vmem:[%s2350 + $0x3c] sm:$0xf]
    %v2383 = vunpack.c.l.b16 %v2351
    %v2384 = vunpack.c.l.b16 %v2352
    %v2385 = vunpack.c.l.b16 %v2353
    %v2386 = vunpack.c.l.b16 %v2354
    %v2387 = vunpack.c.l.b16 %v2355
    %v2388 = vunpack.c.l.b16 %v2356
    %v2389 = vunpack.c.l.b16 %v2357
    %v2390 = vunpack.c.l.b16 %v2358
    %v2391 = vunpack.c.l.b16 %v2359
    %v2392 = vunpack.c.l.b16 %v2360
    %v2393 = vunpack.c.l.b16 %v2361
    %v2394 = vunpack.c.l.b16 %v2362
    %v2395 = vunpack.c.l.b16 %v2363
    %v2396 = vunpack.c.l.b16 %v2364
    %v2397 = vunpack.c.l.b16 %v2365
    %v2398 = vunpack.c.l.b16 %v2366
    %v2399 = vpack.c.b16 %v2384, %v2383
    %v2400 = vpack.c.b16 %v2386, %v2385
    %v2401 = vpack.c.b16 %v2388, %v2387
    %v2402 = vpack.c.b16 %v2390, %v2389
    %v2403 = vpack.c.b16 %v2392, %v2391
    %v2404 = vpack.c.b16 %v2394, %v2393
    %v2405 = vpack.c.b16 %v2396, %v2395
    %v2406 = vpack.c.b16 %v2398, %v2397
    %2415 = vmatprep.subr.bf16.mxu0 0
    %2416 = vmatpush1.bf16.msra.mxu0 %v2399
    %2417 = vmatprep.subr.bf16.mxu0 0
    %2418 = vmatpush1.bf16.msra.mxu0 %v2400
    %2419 = vmatprep.subr.bf16.mxu0 0
    %2420 = vmatpush1.bf16.msra.mxu0 %v2401
    %2421 = vmatprep.subr.bf16.mxu0 0
    %2422 = vmatpush1.bf16.msra.mxu0 %v2402
    %2423 = vmatprep.subr.bf16.mxu0 0
    %2424 = vmatpush1.bf16.msra.mxu0 %v2403
    %2425 = vmatprep.subr.bf16.mxu0 0
    %2426 = vmatpush1.bf16.msra.mxu0 %v2404
    %2427 = vmatprep.subr.bf16.mxu0 0
    %2428 = vmatpush1.bf16.msra.mxu0 %v2405
    %2429 = vmatprep.subr.bf16.mxu0 0
    %2430 = vmatpush1.bf16.msra.mxu0 %v2406
    %2431 = vmatprep.subr.bf16.mxu0 0
    %2432 = vmatpush1.bf16.msra.mxu0 0
    %2433 = vmatprep.subr.bf16.mxu0 0
    %2434 = vmatpush1.bf16.msra.mxu0 0
    %2435 = vmatprep.subr.bf16.mxu0 0
    %2436 = vmatpush1.bf16.msra.mxu0 0
    %2437 = vmatprep.subr.bf16.mxu0 0
    %2438 = vmatpush1.bf16.msra.mxu0 0
    %2439 = vmatprep.subr.bf16.mxu0 0
    %2440 = vmatpush1.bf16.msra.mxu0 0
    %2441 = vmatprep.subr.bf16.mxu0 0
    %2442 = vmatpush1.bf16.msra.mxu0 0
    %2443 = vmatprep.subr.bf16.mxu0 0
    %2444 = vmatpush1.bf16.msra.mxu0 0
    %2445 = vmatprep.subr.bf16.mxu0 0
    %2446 = vmatpush1.bf16.msra.mxu0 0
    %2447 = vmatprep.mubr.bf16.mxu0 0
    %2448 = vmatmul.mubr.bf16.gmra.mrb[0].mxu0 %v2119
    %v2449 = vpop.f32.mrb[0].mxu0
    %v2450 = vadd.f32 0.0, %v2449
    %v2451 = vpop.f32.mrb[0].mxu0
    %v2452 = vpop.f32.mrb[0].mxu0
    %v2453 = vadd.f32 0.0, %v2452
    %v2454 = vpop.f32.mrb[0].mxu0
    %2455 = vmatprep.mubr.bf16.mxu0 0
    %2456 = vmatmul.mubr.bf16.gmra.mrb[0].mxu0 %v2122
    %v2457 = vpop.f32.mrb[0].mxu0
    %v2458 = vadd.f32 0.0, %v2457
    %v2459 = vpop.f32.mrb[0].mxu0
    %v2460 = vpop.f32.mrb[0].mxu0
    %v2461 = vadd.f32 0.0, %v2460
    %v2462 = vpop.f32.mrb[0].mxu0
    %2463 = vdwg.mxu0
    %v2464 = vmax.f32 %v2222, 0.0
    %v2465 = vmax.f32 %v2336, 0.0
    %v2466 = vmax.f32 %v2450, 0.0
    %v2467 = vmax.f32 %v2225, 0.0
    %v2468 = vmax.f32 %v2339, 0.0
    %v2469 = vmax.f32 %v2453, 0.0
    %v2470 = vmax.f32 %v2230, 0.0
    %v2471 = vmax.f32 %v2344, 0.0
    %v2472 = vmax.f32 %v2458, 0.0
    %v2473 = vmax.f32 %v2233, 0.0
    %v2474 = vmax.f32 %v2347, 0.0
    %v2475 = vmax.f32 %v2461, 0.0
    %v2476 = vld [vmem:[#allocation11] sm:$0xff]
    %v2477 = vld [vmem:[#allocation11 + $0x8] sm:$0xff]
    %v2478 = vld [vmem:[#allocation11 + $0x10] sm:$0xff]
    %v2479 = vld [vmem:[#allocation11 + $0x18] sm:$0xff]
    %v2480 = vld [vmem:[#allocation11 + $0x20] sm:$0xff]
    %v2481 = vld [vmem:[#allocation11 + $0x28] sm:$0xff]
    %v2482 = vld [vmem:[#allocation11 + $0x30] sm:$0xff]
    %v2483 = vld [vmem:[#allocation11 + $0x38] sm:$0xff]
    %v2484 = vld [vmem:[#allocation11 + $0x40] sm:$0xff]
    %v2485 = vld [vmem:[#allocation11 + $0x48] sm:$0xff]
    %v2486 = vld [vmem:[#allocation11 + $0x50] sm:$0xff]
    %v2487 = vld [vmem:[#allocation11 + $0x58] sm:$0xff]
    %v2488 = vld [vmem:[#allocation11 + $0x60] sm:$0xff]
    %v2489 = vld [vmem:[#allocation11 + $0x68] sm:$0xff]
    %v2490 = vld [vmem:[#allocation11 + $0x70] sm:$0xff]
    %v2491 = vld [vmem:[#allocation11 + $0x78] sm:$0xff]
    %v2492 = vld [vmem:[#allocation11 + $0x80] sm:$0xff]
    %v2493 = vld [vmem:[#allocation11 + $0x88] sm:$0xff]
    %v2494 = vld [vmem:[#allocation11 + $0x90] sm:$0xff]
    %v2495 = vld [vmem:[#allocation11 + $0x98] sm:$0xff]
    %v2496 = vld [vmem:[#allocation11 + $0xa0] sm:$0xff]
    %v2497 = vld [vmem:[#allocation11 + $0xa8] sm:$0xff]
    %v2498 = vld [vmem:[#allocation11 + $0xb0] sm:$0xff]
    %v2499 = vld [vmem:[#allocation11 + $0xb8] sm:$0xff]
    %v2500 = vld [vmem:[#allocation11 + $0xc0] sm:$0xff]
    %v2501 = vld [vmem:[#allocation11 + $0xc8] sm:$0xff]
    %v2502 = vld [vmem:[#allocation11 + $0xd0] sm:$0xff]
    %v2503 = vld [vmem:[#allocation11 + $0xd8] sm:$0xff]
    %v2504 = vld [vmem:[#allocation11 + $0xe0] sm:$0xff]
    %v2505 = vld [vmem:[#allocation11 + $0xe8] sm:$0xff]
    %v2506 = vld [vmem:[#allocation11 + $0xf0] sm:$0xff]
    %v2507 = vld [vmem:[#allocation11 + $0xf8] sm:$0xff]
    %v2508 = vld [vmem:[#allocation11 + $0x100] sm:$0xff]
    %v2509 = vld [vmem:[#allocation11 + $0x108] sm:$0xff]
    %v2510 = vld [vmem:[#allocation11 + $0x110] sm:$0xff]
    %v2511 = vld [vmem:[#allocation11 + $0x118] sm:$0xff]
    %v2512 = vld [vmem:[#allocation11 + $0x120] sm:$0xff]
    %v2513 = vld [vmem:[#allocation11 + $0x128] sm:$0xff]
    %v2514 = vld [vmem:[#allocation11 + $0x130] sm:$0xff]
    %v2515 = vld [vmem:[#allocation11 + $0x138] sm:$0xff]
    %v2516 = vld [vmem:[#allocation11 + $0x140] sm:$0xff]
    %v2517 = vld [vmem:[#allocation11 + $0x148] sm:$0xff]
    %v2518 = vld [vmem:[#allocation11 + $0x150] sm:$0xff]
    %v2519 = vld [vmem:[#allocation11 + $0x158] sm:$0xff]
    %v2520 = vld [vmem:[#allocation11 + $0x160] sm:$0xff]
    %v2521 = vld [vmem:[#allocation11 + $0x168] sm:$0xff]
    %v2522 = vld [vmem:[#allocation11 + $0x170] sm:$0xff]
    %v2523 = vld [vmem:[#allocation11 + $0x178] sm:$0xff]
    %v2524 = vld [vmem:[%s6] sm:$0x1]
    %v2526 = vlaneseq
    %v2527 = vshrl.u32 %v2526, 7
    %v2528 = vsub.s32 0, %v2527
    %v2529 = vrot.slane %v2524, %v2528
    %2531 = vmatprep.subr.mxu0 0.0
    %2532 = vmatpush1.msra.mxu0 %v2476
    %2533 = vmatprep.subr.mxu0 0.0
    %2534 = vmatpush1.msra.mxu0 %v2477
    %2535 = vmatprep.subr.mxu0 0.0
    %2536 = vmatpush1.msra.mxu0 %v2478
    %2537 = vmatprep.subr.mxu0 0.0
    %2538 = vmatpush1.msra.mxu0 %v2479
    %2539 = vmatprep.subr.mxu0 0.0
    %2540 = vmatpush1.msra.mxu0 %v2480
    %2541 = vmatprep.subr.mxu0 0.0
    %2542 = vmatpush1.msra.mxu0 %v2481
    %2543 = vmatprep.subr.mxu0 0.0
    %2544 = vmatpush1.msra.mxu0 %v2482
    %2545 = vmatprep.subr.mxu0 0.0
    %2546 = vmatpush1.msra.mxu0 %v2483
    %2547 = vmatprep.subr.mxu0 0.0
    %2548 = vmatpush1.msra.mxu0 %v2484
    %2549 = vmatprep.subr.mxu0 0.0
    %2550 = vmatpush1.msra.mxu0 %v2485
    %2551 = vmatprep.subr.mxu0 0.0
    %2552 = vmatpush1.msra.mxu0 %v2486
    %2553 = vmatprep.subr.mxu0 0.0
    %2554 = vmatpush1.msra.mxu0 %v2487
    %2555 = vmatprep.subr.mxu0 0.0
    %2556 = vmatpush1.msra.mxu0 %v2488
    %2557 = vmatprep.subr.mxu0 0.0
    %2558 = vmatpush1.msra.mxu0 %v2489
    %2559 = vmatprep.subr.mxu0 0.0
    %2560 = vmatpush1.msra.mxu0 %v2490
    %2561 = vmatprep.subr.mxu0 0.0
    %2562 = vmatpush1.msra.mxu0 %v2491
    %2563 = vmatprep.subr.mxu0 0.0
    %2564 = vmatpush1.msra.mxu0 %v2492
    %2565 = vmatprep.subr.mxu0 0.0
    %2566 = vmatpush1.msra.mxu0 %v2493
    %2567 = vmatprep.subr.mxu0 0.0
    %2568 = vmatpush1.msra.mxu0 %v2494
    %2569 = vmatprep.subr.mxu0 0.0
    %2570 = vmatpush1.msra.mxu0 %v2495
    %2571 = vmatprep.subr.mxu0 0.0
    %2572 = vmatpush1.msra.mxu0 %v2496
    %2573 = vmatprep.subr.mxu0 0.0
    %2574 = vmatpush1.msra.mxu0 %v2497
    %2575 = vmatprep.subr.mxu0 0.0
    %2576 = vmatpush1.msra.mxu0 %v2498
    %2577 = vmatprep.subr.mxu0 0.0
    %2578 = vmatpush1.msra.mxu0 %v2499
    %2579 = vmatprep.subr.mxu0 0.0
    %2580 = vmatpush1.msra.mxu0 %v2500
    %2581 = vmatprep.subr.mxu0 0.0
    %2582 = vmatpush1.msra.mxu0 %v2501
    %2583 = vmatprep.subr.mxu0 0.0
    %2584 = vmatpush1.msra.mxu0 %v2502
    %2585 = vmatprep.subr.mxu0 0.0
    %2586 = vmatpush1.msra.mxu0 %v2503
    %2587 = vmatprep.subr.mxu0 0.0
    %2588 = vmatpush1.msra.mxu0 %v2504
    %2589 = vmatprep.subr.mxu0 0.0
    %2590 = vmatpush1.msra.mxu0 %v2505
    %2591 = vmatprep.subr.mxu0 0.0
    %2592 = vmatpush1.msra.mxu0 %v2506
    %2593 = vmatprep.subr.mxu0 0.0
    %2594 = vmatpush1.msra.mxu0 %v2507
    %2595 = vmatprep.mubr.f32.mxu0 %v2465
    %2596 = vmatmul.mubr.f32.gmra.mrb[0].mxu0 %v2464
    %v2597 = vpop.f32.mrb[0].mxu0
    %v2598 = vadd.f32 %v2529, %v2597
    %v2599 = vpop.f32.mrb[0].mxu0
    %2600 = vmatprep.mubr.f32.mxu0 %v2468
    %2601 = vmatmul.mubr.f32.gmra.mrb[0].mxu0 %v2467
    %v2602 = vpop.f32.mrb[0].mxu0
    %v2603 = vadd.f32 %v2529, %v2602
    %v2604 = vpop.f32.mrb[0].mxu0
    %2605 = vmatprep.mubr.f32.mxu0 %v2471
    %2606 = vmatmul.mubr.f32.gmra.mrb[0].mxu0 %v2470
    %v2607 = vpop.f32.mrb[0].mxu0
    %v2608 = vadd.f32 %v2529, %v2607
    %v2609 = vpop.f32.mrb[0].mxu0
    %2610 = vmatprep.mubr.f32.mxu0 %v2474
    %2611 = vmatmul.mubr.f32.gmra.mrb[0].mxu0 %v2473
    %v2612 = vpop.f32.mrb[0].mxu0
    %v2613 = vadd.f32 %v2529, %v2612
    %v2614 = vpop.f32.mrb[0].mxu0
    %2615 = vdwg.mxu0
    %2616 = vmatprep.subr.mxu0 0.0
    %2617 = vmatpush1.msra.mxu0 %v2508
    %2618 = vmatprep.subr.mxu0 0.0
    %2619 = vmatpush1.msra.mxu0 %v2509
    %2620 = vmatprep.subr.mxu0 0.0
    %2621 = vmatpush1.msra.mxu0 %v2510
    %2622 = vmatprep.subr.mxu0 0.0
    %2623 = vmatpush1.msra.mxu0 %v2511
    %2624 = vmatprep.subr.mxu0 0.0
    %2625 = vmatpush1.msra.mxu0 %v2512
    %2626 = vmatprep.subr.mxu0 0.0
    %2627 = vmatpush1.msra.mxu0 %v2513
    %2628 = vmatprep.subr.mxu0 0.0
    %2629 = vmatpush1.msra.mxu0 %v2514
    %2630 = vmatprep.subr.mxu0 0.0
    %2631 = vmatpush1.msra.mxu0 %v2515
    %2632 = vmatprep.subr.mxu0 0.0
    %2633 = vmatpush1.msra.mxu0 %v2516
    %2634 = vmatprep.subr.mxu0 0.0
    %2635 = vmatpush1.msra.mxu0 %v2517
    %2636 = vmatprep.subr.mxu0 0.0
    %2637 = vmatpush1.msra.mxu0 %v2518
    %2638 = vmatprep.subr.mxu0 0.0
    %2639 = vmatpush1.msra.mxu0 %v2519
    %2640 = vmatprep.subr.mxu0 0.0
    %2641 = vmatpush1.msra.mxu0 %v2520
    %2642 = vmatprep.subr.mxu0 0.0
    %2643 = vmatpush1.msra.mxu0 %v2521
    %2644 = vmatprep.subr.mxu0 0.0
    %2645 = vmatpush1.msra.mxu0 %v2522
    %2646 = vmatprep.subr.mxu0 0.0
    %2647 = vmatpush1.msra.mxu0 %v2523
    %2648 = vmatprep.subr.mxu0 0.0
    %2649 = vmatpush1.msra.mxu0 0.0
    %2650 = vmatprep.subr.mxu0 0.0
    %2651 = vmatpush1.msra.mxu0 0.0
    %2652 = vmatprep.subr.mxu0 0.0
    %2653 = vmatpush1.msra.mxu0 0.0
    %2654 = vmatprep.subr.mxu0 0.0
    %2655 = vmatpush1.msra.mxu0 0.0
    %2656 = vmatprep.subr.mxu0 0.0
    %2657 = vmatpush1.msra.mxu0 0.0
    %2658 = vmatprep.subr.mxu0 0.0
    %2659 = vmatpush1.msra.mxu0 0.0
    %2660 = vmatprep.subr.mxu0 0.0
    %2661 = vmatpush1.msra.mxu0 0.0
    %2662 = vmatprep.subr.mxu0 0.0
    %2663 = vmatpush1.msra.mxu0 0.0
    %2664 = vmatprep.subr.mxu0 0.0
    %2665 = vmatpush1.msra.mxu0 0.0
    %2666 = vmatprep.subr.mxu0 0.0
    %2667 = vmatpush1.msra.mxu0 0.0
    %2668 = vmatprep.subr.mxu0 0.0
    %2669 = vmatpush1.msra.mxu0 0.0
    %2670 = vmatprep.subr.mxu0 0.0
    %2671 = vmatpush1.msra.mxu0 0.0
    %2672 = vmatprep.subr.mxu0 0.0
    %2673 = vmatpush1.msra.mxu0 0.0
    %2674 = vmatprep.subr.mxu0 0.0
    %2675 = vmatpush1.msra.mxu0 0.0
    %2676 = vmatprep.subr.mxu0 0.0
    %2677 = vmatpush1.msra.mxu0 0.0
    %2678 = vmatprep.subr.mxu0 0.0
    %2679 = vmatpush1.msra.mxu0 0.0
    %2680 = vmatprep.mubr.f32.mxu0 0.0
    %2681 = vmatmul.mubr.f32.gmra.mrb[0].mxu0 %v2466
    %v2682 = vpop.f32.mrb[0].mxu0
    %v2683 = vadd.f32 %v2598, %v2682
    %v2684 = vpop.f32.mrb[0].mxu0
    %2685 = vmatprep.mubr.f32.mxu0 0.0
    %2686 = vmatmul.mubr.f32.gmra.mrb[0].mxu0 %v2469
    %v2687 = vpop.f32.mrb[0].mxu0
    %v2688 = vadd.f32 %v2603, %v2687
    %v2689 = vpop.f32.mrb[0].mxu0
    %2690 = vmatprep.mubr.f32.mxu0 0.0
    %2691 = vmatmul.mubr.f32.gmra.mrb[0].mxu0 %v2472
    %v2692 = vpop.f32.mrb[0].mxu0
    %v2693 = vadd.f32 %v2608, %v2692
    %v2694 = vpop.f32.mrb[0].mxu0
    %2695 = vmatprep.mubr.f32.mxu0 0.0
    %2696 = vmatmul.mubr.f32.gmra.mrb[0].mxu0 %v2475
    %v2697 = vpop.f32.mrb[0].mxu0
    %v2698 = vadd.f32 %v2613, %v2697
    %v2699 = vpop.f32.mrb[0].mxu0
    %2700 = vdwg.mxu0
    %2701 = vst [vmem:[#allocation13] sm:$0xff] %v2683
    %2702 = vst [vmem:[#allocation13 + $0x8] sm:$0xff] %v2688
    %2703 = vst [vmem:[#allocation13 + $0x10] sm:$0xff] %v2693
    %2704 = vst [vmem:[#allocation13 + $0x18] sm:$0xff] %v2698
    // Predicated region
    $region54: #{tpu_custom_call.1} parent=1 // pred_check
      _
    $region55: #{tpu_custom_call.1} parent=1 // pred_check_branch
      %2706 = sbr.rel (0) target = $region57
    $region56: #{tpu_custom_call.1} parent=1 // pred_region
      %s2708 = ssub.s32 512, 512
      %2709 = vsyncadd [#allocation4], %s2708
      %s2710 = sshll.u32 [#allocation13], 4
      %s2711 = int_to_ptr.vmem [resolvable:$true] %s2710
      %2716 = dma.vmem_to_hbm [thread:$0]  %s2711, 512, %s7, [#allocation4], 128, 128, 8
    $region57: #{tpu_custom_call.1} parent=1 // pred_fallthru
      _
    // Predicated region
    $region58: #{tpu_custom_call.1} parent=1 // pred_check
      _
    $region59: #{tpu_custom_call.1} parent=1 // pred_check_branch
      %2718 = sbr.rel (0) target = $region61
    $region60: #{tpu_custom_call.1} parent=1 // pred_region
      %2719 = dma.done [#allocation4], 512
    $region61: #{tpu_custom_call.1} parent=1 // pred_fallthru
      _
    %2720 = vsyncpa [#allocation3], 1
    %2721 = vsyncpa [#allocation6], 1
    %2722 = vsyncpa [#allocation9], 1
    %2723 = vsyncpa [#allocation12], 1
    %2724 = vsyncpa [#allocation4], 1

</llo_original>
